<compile_context>
chip_gen: v7x
topology: tpu7x:2x2x1
jax: 0.10.0
libtpu: 0.0.40
codegen_flags: <defaults>
</compile_context>

<pallas_src>
import jax
import jax.numpy as jnp
from jax import lax
from jax.experimental import pallas as pl
from jax.experimental.pallas import tpu as pltpu


def captioner_kernel(
    img_ref,                       # (bb, A, C)     vectorized image features
    attimg_ref,                    # (bb, A, Hatt)  fc1(img), precomputed
    gicap_r_ref,                   # (T, bb, R)     c_emb @ W_ir_cap + b_ir
    gicap_z_ref,                   # (T, bb, R)     c_emb @ W_iz_cap + b_iz
    gicap_n_ref,                   # (T, bb, R)     c_emb @ W_in_cap + b_in
    wa1_ref, ba1_ref,              # (R, Hatt), (1, Hatt)   attention.fc1
    wa2_ref, ba2_ref,              # (1, Hatt), (1, 1)      attention.fc2
    wa3_ref, ba3_ref,              # (C, C),    (1, C)      attention.fc3
    wir_ref, wiz_ref, win_ref,     # (C, R) x3   img part of GRU W_ih, split
    whr_ref, whz_ref, whn_ref,     # (R, R) x3   GRU W_hh, split
    bhr_ref, bhz_ref, bhn_ref,     # (1, R) x3   GRU b_hh, split
    hidden_ref,                    # out (T, bb, R)
    att_ref,                       # out (T, bb, A)
    h_scr,                         # VMEM (bb, R)  hidden-state carry
):
    T = gicap_r_ref.shape[0]

    # Constant operands: load once, closed over by the loop body.
    img = img_ref[...]
    attimg = attimg_ref[...]
    wa1 = wa1_ref[...]; ba1 = ba1_ref[...]
    wa2 = wa2_ref[...]; ba2 = ba2_ref[...]
    wa3 = wa3_ref[...]; ba3 = ba3_ref[...]
    wir = wir_ref[...]; wiz = wiz_ref[...]; win = win_ref[...]
    whr = whr_ref[...]; whz = whz_ref[...]; whn = whn_ref[...]
    bhr = bhr_ref[...]; bhz = bhz_ref[...]; bhn = bhn_ref[...]

    h_scr[...] = jnp.zeros(h_scr.shape, h_scr.dtype)

    def step(t, carry):
        h = h_scr[...]                                          # (bb, R)

        # ---------------- Attention ----------------
        z1 = jnp.dot(h, wa1, preferred_element_type=jnp.float32) + ba1   # (bb, Hatt)
        th = jnp.tanh(attimg + z1[:, None, :])                  # (bb, A, Hatt)
        # fc2: Hatt -> 1 as a lane reduction
        score = jnp.sum(th * wa2[None, :, :], axis=2) + ba2     # (bb, A)
        m = jnp.max(score, axis=1, keepdims=True)
        e = jnp.exp(score - m)
        a = e / jnp.sum(e, axis=1, keepdims=True)               # softmax over area
        attended = jnp.sum(img * a[:, :, None], axis=1)         # (bb, C)
        img_emb = jnp.maximum(
            jnp.dot(attended, wa3, preferred_element_type=jnp.float32) + ba3,
            0.0)                                                # relu(fc3(.))

        # ---------------- GRU step (no concat, no 3R slicing) ----------------
        gi_r = jnp.dot(img_emb, wir, preferred_element_type=jnp.float32) + gicap_r_ref[t]
        gi_z = jnp.dot(img_emb, wiz, preferred_element_type=jnp.float32) + gicap_z_ref[t]
        gi_n = jnp.dot(img_emb, win, preferred_element_type=jnp.float32) + gicap_n_ref[t]
        gh_r = jnp.dot(h, whr, preferred_element_type=jnp.float32) + bhr
        gh_z = jnp.dot(h, whz, preferred_element_type=jnp.float32) + bhz
        gh_n = jnp.dot(h, whn, preferred_element_type=jnp.float32) + bhn
        r = jax.nn.sigmoid(gi_r + gh_r)
        zg = jax.nn.sigmoid(gi_z + gh_z)
        n = jnp.tanh(gi_n + r * gh_n)
        h_new = (1.0 - zg) * n + zg * h

        h_scr[...] = h_new
        hidden_ref[t] = h_new
        att_ref[t] = a
        return carry

    lax.fori_loop(0, T, step, 0)


def attention_captioner_forward(img_nchw, source, gt_pos, params, batch_block=None):
    B, C, W, _ = img_nchw.shape
    T = source.shape[1]
    A = W * W

    # vectorize_img: [B,C,W,W] -> [B,C,A] -> [B,A,C]
    img = jnp.transpose(img_nchw.reshape(B, C, A), (0, 2, 1)).astype(jnp.float32)

    cap_tab = params["caption_embedding"]        # (Cv+1, E)
    pos_tab = params["pos_embedding"]            # (Pv+1, P)
    Hatt = params["cap_fc1_w"].shape[0]
    R = params["gru_w_hh"].shape[1]

    # att_img_features = fc1(img): one big GEMM in the wrapper (not per step).
    attimg = (jnp.einsum("bac,hc->bah", img, params["cap_fc1_w"])
              + params["cap_fc1_b"]).astype(jnp.float32)        # (B, A, Hatt)

    # Caption-embedding half of the GRU input GEMM, hoisted out of the loop.
    c_emb_all = jnp.transpose(cap_tab[source], (1, 0, 2))        # (T, B, E)
    w_ih = params["gru_w_ih"]                                    # (3R, C+E)
    b_ih = params["gru_b_ih"]                                    # (3R,)
    w_hh = params["gru_w_hh"]                                    # (3R, R)
    b_hh = params["gru_b_hh"]                                    # (3R,)

    wih_img = w_ih[:, :C].T                                      # (C, 3R)
    wih_cap = w_ih[:, C:].T                                      # (E, 3R)
    gicap = jnp.einsum("tbe,ez->tbz", c_emb_all, wih_cap) + b_ih  # (T, B, 3R)
    gicap_r = gicap[..., :R]
    gicap_z = gicap[..., R:2 * R]
    gicap_n = gicap[..., 2 * R:]

    wir, wiz, win = wih_img[:, :R], wih_img[:, R:2 * R], wih_img[:, 2 * R:]
    whh = w_hh.T                                                 # (R, 3R)
    whr, whz, whn = whh[:, :R], whh[:, R:2 * R], whh[:, 2 * R:]
    bhr = b_hh[None, :R]
    bhz = b_hh[None, R:2 * R]
    bhn = b_hh[None, 2 * R:]

    wa1, ba1 = params["att_fc1_w"].T, params["att_fc1_b"][None, :]
    wa2, ba2 = params["att_fc2_w"], params["att_fc2_b"][None, :]
    wa3, ba3 = params["att_fc3_w"].T, params["att_fc3_b"][None, :]

    weights = [wa1, ba1, wa2, ba2, wa3, ba3,
               wir, wiz, win, whr, whz, whn, bhr, bhz, bhn]

    # Optional batch blocking: on v7x set batch_block = B // 2 (multiple of 8)
    # to shard independent sequences across both TensorCores.
    bb = B if batch_block is None else batch_block
    assert B % bb == 0
    nb = B // bb

    def rep_spec(arr):
        nd = arr.ndim
        return pl.BlockSpec(arr.shape, lambda b, _nd=nd: (0,) * _nd)

    in_specs = (
        [pl.BlockSpec((bb, A, C), lambda b: (b, 0, 0)),       # img
         pl.BlockSpec((bb, A, Hatt), lambda b: (b, 0, 0)),    # attimg
         pl.BlockSpec((T, bb, R), lambda b: (0, b, 0)),       # gicap_r
         pl.BlockSpec((T, bb, R), lambda b: (0, b, 0)),       # gicap_z
         pl.BlockSpec((T, bb, R), lambda b: (0, b, 0))]       # gicap_n
        + [rep_spec(w) for w in weights]
    )
    out_specs = [
        pl.BlockSpec((T, bb, R), lambda b: (0, b, 0)),
        pl.BlockSpec((T, bb, A), lambda b: (0, b, 0)),
    ]
    out_shape = [
        jax.ShapeDtypeStruct((T, B, R), jnp.float32),
        jax.ShapeDtypeStruct((T, B, A), jnp.float32),
    ]

    fn = pl.pallas_call(
        captioner_kernel,
        out_shape=out_shape,
        grid_spec=pltpu.PrefetchScalarGridSpec(
            num_scalar_prefetch=0,
            grid=(nb,),
            in_specs=in_specs,
            out_specs=out_specs,
            scratch_shapes=[pltpu.VMEM((bb, R), jnp.float32)],
        ),
        compiler_params=pltpu.CompilerParams(
            dimension_semantics=("parallel",)),   # batch blocks are independent
    )

    hidden_tb, att_tb = fn(img, attimg, gicap_r, gicap_z, gicap_n, *weights)

    hidden = jnp.transpose(hidden_tb, (1, 0, 2))                 # (B, T, R)
    att = jnp.transpose(att_tb, (1, 0, 2))                       # (B, T, A)

    # ---------------- Decoder heads, hoisted to plain XLA GEMMs ----------------
    pos_logits = (jnp.einsum("btr,pr->btp", hidden, params["dec_fc1_w"])
                  + params["dec_fc1_b"])                         # (B, T, Pv+1)
    pos_emb = pos_tab[gt_pos]                                    # (B, T, P)
    wd2 = params["dec_fc2_w"]                                    # (Cv+1, R+P)
    logits = (jnp.einsum("btr,cr->btc", hidden, wd2[:, :R])
              + jnp.einsum("btp,cp->btc", pos_emb, wd2[:, R:])
              + params["dec_fc2_b"])                             # (B, T, Cv+1)

    return dict(logits=logits, pos_logits=pos_logits, hidden=hidden, att=att)


def reference_forward(img_nchw, source, gt_pos, params):
    """Pure-JAX replica of the PyTorch forward (eval / teacher-forcing path)."""
    B, C, W, _ = img_nchw.shape
    T = source.shape[1]
    A = W * W
    img = jnp.transpose(img_nchw.reshape(B, C, A), (0, 2, 1)).astype(jnp.float32)
    attimg = jnp.einsum("bac,hc->bah", img, params["cap_fc1_w"]) + params["cap_fc1_b"]
    R = params["gru_w_hh"].shape[1]
    cap = params["caption_embedding"][source]      # (B,T,E)
    pos = params["pos_embedding"][gt_pos]          # (B,T,P)
    h = jnp.zeros((B, R), jnp.float32)
    outs = {"logits": [], "pos_logits": [], "hidden": [], "att": []}
    for t in range(T):
        z1 = h @ params["att_fc1_w"].T + params["att_fc1_b"]
        th = jnp.tanh(attimg + z1[:, None, :])
        score = jnp.einsum("bah,h->ba", th, params["att_fc2_w"][0]) + params["att_fc2_b"][0]
        a = jax.nn.softmax(score, axis=1)
        attended = jnp.sum(img * a[:, :, None], axis=1)
        img_emb = jax.nn.relu(attended @ params["att_fc3_w"].T + params["att_fc3_b"])
        x = jnp.concatenate([img_emb, cap[:, t]], axis=1)
        gi = x @ params["gru_w_ih"].T + params["gru_b_ih"]
        gh = h @ params["gru_w_hh"].T + params["gru_b_hh"]
        r = jax.nn.sigmoid(gi[:, :R] + gh[:, :R])
        zg = jax.nn.sigmoid(gi[:, R:2 * R] + gh[:, R:2 * R])
        n = jnp.tanh(gi[:, 2 * R:] + r * gh[:, 2 * R:])
        h = (1.0 - zg) * n + zg * h
        pos_logits = h @ params["dec_fc1_w"].T + params["dec_fc1_b"]
        logits = (jnp.concatenate([h, pos[:, t]], axis=1)
                  @ params["dec_fc2_w"].T + params["dec_fc2_b"])
        outs["logits"].append(logits)
        outs["pos_logits"].append(pos_logits)
        outs["hidden"].append(h)
        outs["att"].append(a)
    return {k: jnp.stack(v, axis=1) for k, v in outs.items()}


def init_params(key, *, C, Hatt, R, E, P, Cv, Pv):
    keys = iter(jax.random.split(key, 16))

    def lin(kk, out_dim, in_dim, scale=0.1):
        kw, kb = jax.random.split(kk)
        return (scale * jax.random.normal(kw, (out_dim, in_dim), jnp.float32),
                scale * jax.random.normal(kb, (out_dim,), jnp.float32))

    p = {}
    p["cap_fc1_w"], p["cap_fc1_b"] = lin(next(keys), Hatt, C)        # fc1: C -> Hatt
    p["att_fc1_w"], p["att_fc1_b"] = lin(next(keys), Hatt, R)        # att.fc1: R -> Hatt
    p["att_fc2_w"], p["att_fc2_b"] = lin(next(keys), 1, Hatt)        # att.fc2: Hatt -> 1
    p["att_fc3_w"], p["att_fc3_b"] = lin(next(keys), C, C)           # att.fc3: C -> C
    p["gru_w_ih"] = 0.1 * jax.random.normal(next(keys), (3 * R, C + E), jnp.float32)
    p["gru_w_hh"] = 0.1 * jax.random.normal(next(keys), (3 * R, R), jnp.float32)
    p["gru_b_ih"] = 0.1 * jax.random.normal(next(keys), (3 * R,), jnp.float32)
    p["gru_b_hh"] = 0.1 * jax.random.normal(next(keys), (3 * R,), jnp.float32)
    p["dec_fc1_w"], p["dec_fc1_b"] = lin(next(keys), Pv + 1, R)      # dec.fc1: R -> Pv+1
    p["dec_fc2_w"], p["dec_fc2_b"] = lin(next(keys), Cv + 1, R + P)  # dec.fc2: R+P -> Cv+1
    cap_emb = jax.random.uniform(next(keys), (Cv + 1, E), jnp.float32, -0.1, 0.1)
    p["caption_embedding"] = cap_emb.at[-1].set(0.0)                 # padding_idx = Cv
    pos_emb = 0.1 * jax.random.normal(next(keys), (Pv + 1, P), jnp.float32)
    p["pos_embedding"] = pos_emb.at[-1].set(0.0)                     # padding_idx = Pv
    return p


if __name__ == "__main__":
    # small, module-consistent shapes
    B, C, W = 2, 4, 4            # batch, image_channels, image_feature_size (A = 16)
    T = 8                        # seq length
    Hatt, R = 32, 32             # att_hidden_size, rnn_size
    E, P = 16, 8                 # word_embedding_size, pos_emb_size
    Cv, Pv = 20, 10              # c_vocab_size, pos_vocab_size

    key = jax.random.PRNGKey(0)
    k_img, k_src, k_pos, k_par = jax.random.split(key, 4)
    img_features = jax.random.normal(k_img, (B, C, W, W), jnp.float32)   # NCHW
    source = jax.random.randint(k_src, (B, T), 0, Cv)
    gt_pos = jax.random.randint(k_pos, (B, T), 0, Pv)
    params = init_params(k_par, C=C, Hatt=Hatt, R=R, E=E, P=P, Cv=Cv, Pv=Pv)

    out = attention_captioner_forward(img_features, source, gt_pos, params)
    out = jax.tree_util.tree_map(jax.block_until_ready, out)

    ref = reference_forward(img_features, source, gt_pos, params)
    for name in ("logits", "pos_logits", "hidden", "att"):
        diff = float(jnp.max(jnp.abs(out[name] - ref[name])))
        assert diff < 1e-3, (name, diff)

    print("KERNEL_OK")
</pallas_src>

<mosaic_0001>
module attributes {stable_mosaic.version = 11 : i64} {
  func.func @captioner_kernel(%arg0: i32, %arg1: memref<2x16x4xf32, #tpu.memory_space<vmem>>, %arg2: memref<2x16x32xf32, #tpu.memory_space<vmem>>, %arg3: memref<8x2x32xf32, #tpu.memory_space<vmem>>, %arg4: memref<8x2x32xf32, #tpu.memory_space<vmem>>, %arg5: memref<8x2x32xf32, #tpu.memory_space<vmem>>, %arg6: memref<32x32xf32, #tpu.memory_space<vmem>>, %arg7: memref<1x32xf32, #tpu.memory_space<vmem>>, %arg8: memref<1x32xf32, #tpu.memory_space<vmem>>, %arg9: memref<1x1xf32, #tpu.memory_space<vmem>>, %arg10: memref<4x4xf32, #tpu.memory_space<vmem>>, %arg11: memref<1x4xf32, #tpu.memory_space<vmem>>, %arg12: memref<4x32xf32, #tpu.memory_space<vmem>>, %arg13: memref<4x32xf32, #tpu.memory_space<vmem>>, %arg14: memref<4x32xf32, #tpu.memory_space<vmem>>, %arg15: memref<32x32xf32, #tpu.memory_space<vmem>>, %arg16: memref<32x32xf32, #tpu.memory_space<vmem>>, %arg17: memref<32x32xf32, #tpu.memory_space<vmem>>, %arg18: memref<1x32xf32, #tpu.memory_space<vmem>>, %arg19: memref<1x32xf32, #tpu.memory_space<vmem>>, %arg20: memref<1x32xf32, #tpu.memory_space<vmem>>, %arg21: memref<8x2x32xf32, #tpu.memory_space<vmem>>, %arg22: memref<8x2x16xf32, #tpu.memory_space<vmem>>, %arg23: memref<2x32xf32, #tpu.memory_space<vmem>>) attributes {dimension_semantics = [#tpu.dimension_semantics<parallel>], iteration_bounds = array<i64: 1>, scalar_prefetch = 0 : i64, scratch_operands = 1 : i64, tpu.core_type = #tpu.core_type<tc>, window_params = [{transform_indices = @transform_0, window_bounds = array<i64: 2, 16, 4>}, {transform_indices = @transform_1, window_bounds = array<i64: 2, 16, 32>}, {transform_indices = @transform_2, window_bounds = array<i64: 8, 2, 32>}, {transform_indices = @transform_3, window_bounds = array<i64: 8, 2, 32>}, {transform_indices = @transform_4, window_bounds = array<i64: 8, 2, 32>}, {pipeline_mode = #tpu.pipeline_mode<synchronous>, transform_indices = @transform_5, window_bounds = array<i64: 32, 32>}, {pipeline_mode = #tpu.pipeline_mode<synchronous>, transform_indices = @transform_6, window_bounds = array<i64: 1, 32>}, {pipeline_mode = #tpu.pipeline_mode<synchronous>, transform_indices = @transform_7, window_bounds = array<i64: 1, 32>}, {pipeline_mode = #tpu.pipeline_mode<synchronous>, transform_indices = @transform_8, window_bounds = array<i64: 1, 1>}, {pipeline_mode = #tpu.pipeline_mode<synchronous>, transform_indices = @transform_9, window_bounds = array<i64: 4, 4>}, {pipeline_mode = #tpu.pipeline_mode<synchronous>, transform_indices = @transform_10, window_bounds = array<i64: 1, 4>}, {pipeline_mode = #tpu.pipeline_mode<synchronous>, transform_indices = @transform_11, window_bounds = array<i64: 4, 32>}, {pipeline_mode = #tpu.pipeline_mode<synchronous>, transform_indices = @transform_12, window_bounds = array<i64: 4, 32>}, {pipeline_mode = #tpu.pipeline_mode<synchronous>, transform_indices = @transform_13, window_bounds = array<i64: 4, 32>}, {pipeline_mode = #tpu.pipeline_mode<synchronous>, transform_indices = @transform_14, window_bounds = array<i64: 32, 32>}, {pipeline_mode = #tpu.pipeline_mode<synchronous>, transform_indices = @transform_15, window_bounds = array<i64: 32, 32>}, {pipeline_mode = #tpu.pipeline_mode<synchronous>, transform_indices = @transform_16, window_bounds = array<i64: 32, 32>}, {pipeline_mode = #tpu.pipeline_mode<synchronous>, transform_indices = @transform_17, window_bounds = array<i64: 1, 32>}, {pipeline_mode = #tpu.pipeline_mode<synchronous>, transform_indices = @transform_18, window_bounds = array<i64: 1, 32>}, {pipeline_mode = #tpu.pipeline_mode<synchronous>, transform_indices = @transform_19, window_bounds = array<i64: 1, 32>}, {transform_indices = @transform_20, window_bounds = array<i64: 8, 2, 32>}, {transform_indices = @transform_21, window_bounds = array<i64: 8, 2, 16>}]} {
    %c0 = arith.constant 0 : index
    %c0_0 = arith.constant 0 : index
    %c0_1 = arith.constant 0 : index
    %0 = vector.load %arg1[%c0, %c0_0, %c0_1] : memref<2x16x4xf32, #tpu.memory_space<vmem>>, vector<2x16x4xf32>
    %c0_2 = arith.constant 0 : index
    %c0_3 = arith.constant 0 : index
    %c0_4 = arith.constant 0 : index
    %1 = vector.load %arg2[%c0_2, %c0_3, %c0_4] : memref<2x16x32xf32, #tpu.memory_space<vmem>>, vector<2x16x32xf32>
    %c0_5 = arith.constant 0 : index
    %c0_6 = arith.constant 0 : index
    %2 = vector.load %arg6[%c0_5, %c0_6] : memref<32x32xf32, #tpu.memory_space<vmem>>, vector<32x32xf32>
    %c0_7 = arith.constant 0 : index
    %c0_8 = arith.constant 0 : index
    %3 = vector.load %arg7[%c0_7, %c0_8] : memref<1x32xf32, #tpu.memory_space<vmem>>, vector<1x32xf32>
    %c0_9 = arith.constant 0 : index
    %c0_10 = arith.constant 0 : index
    %4 = vector.load %arg8[%c0_9, %c0_10] : memref<1x32xf32, #tpu.memory_space<vmem>>, vector<1x32xf32>
    %c0_11 = arith.constant 0 : index
    %c0_12 = arith.constant 0 : index
    %5 = vector.load %arg9[%c0_11, %c0_12] : memref<1x1xf32, #tpu.memory_space<vmem>>, vector<1x1xf32>
    %c0_13 = arith.constant 0 : index
    %c0_14 = arith.constant 0 : index
    %6 = vector.load %arg10[%c0_13, %c0_14] : memref<4x4xf32, #tpu.memory_space<vmem>>, vector<4x4xf32>
    %c0_15 = arith.constant 0 : index
    %c0_16 = arith.constant 0 : index
    %7 = vector.load %arg11[%c0_15, %c0_16] : memref<1x4xf32, #tpu.memory_space<vmem>>, vector<1x4xf32>
    %c0_17 = arith.constant 0 : index
    %c0_18 = arith.constant 0 : index
    %8 = vector.load %arg12[%c0_17, %c0_18] : memref<4x32xf32, #tpu.memory_space<vmem>>, vector<4x32xf32>
    %c0_19 = arith.constant 0 : index
    %c0_20 = arith.constant 0 : index
    %9 = vector.load %arg13[%c0_19, %c0_20] : memref<4x32xf32, #tpu.memory_space<vmem>>, vector<4x32xf32>
    %c0_21 = arith.constant 0 : index
    %c0_22 = arith.constant 0 : index
    %10 = vector.load %arg14[%c0_21, %c0_22] : memref<4x32xf32, #tpu.memory_space<vmem>>, vector<4x32xf32>
    %c0_23 = arith.constant 0 : index
    %c0_24 = arith.constant 0 : index
    %11 = vector.load %arg15[%c0_23, %c0_24] : memref<32x32xf32, #tpu.memory_space<vmem>>, vector<32x32xf32>
    %c0_25 = arith.constant 0 : index
    %c0_26 = arith.constant 0 : index
    %12 = vector.load %arg16[%c0_25, %c0_26] : memref<32x32xf32, #tpu.memory_space<vmem>>, vector<32x32xf32>
    %c0_27 = arith.constant 0 : index
    %c0_28 = arith.constant 0 : index
    %13 = vector.load %arg17[%c0_27, %c0_28] : memref<32x32xf32, #tpu.memory_space<vmem>>, vector<32x32xf32>
    %c0_29 = arith.constant 0 : index
    %c0_30 = arith.constant 0 : index
    %14 = vector.load %arg18[%c0_29, %c0_30] : memref<1x32xf32, #tpu.memory_space<vmem>>, vector<1x32xf32>
    %c0_31 = arith.constant 0 : index
    %c0_32 = arith.constant 0 : index
    %15 = vector.load %arg19[%c0_31, %c0_32] : memref<1x32xf32, #tpu.memory_space<vmem>>, vector<1x32xf32>
    %c0_33 = arith.constant 0 : index
    %c0_34 = arith.constant 0 : index
    %16 = vector.load %arg20[%c0_33, %c0_34] : memref<1x32xf32, #tpu.memory_space<vmem>>, vector<1x32xf32>
    %cst = arith.constant 0.000000e+00 : f32
    %17 = vector.broadcast %cst : f32 to vector<2x32xf32>
    %c0_35 = arith.constant 0 : index
    %c0_36 = arith.constant 0 : index
    %18 = vector.load %arg23[%c0_35, %c0_36] : memref<2x32xf32, #tpu.memory_space<vmem>>, vector<2x32xf32>
    tpu.vector_store %arg23[%c0_35, %c0_36], %17 {strides = array<i32>} : memref<2x32xf32, #tpu.memory_space<vmem>>, vector<2x32xf32>,
    %c0_i32 = arith.constant 0 : i32
    %c8_i32 = arith.constant 8 : i32
    %19 = arith.addi %c0_i32, %c8_i32 : i32
    %c1_i32 = arith.constant 1 : i32
    scf.for %arg24 = %c0_i32 to %19 step %c1_i32  : i32 {
      %c0_38 = arith.constant 0 : index
      %c0_39 = arith.constant 0 : index
      %20 = vector.load %arg23[%c0_38, %c0_39] : memref<2x32xf32, #tpu.memory_space<vmem>>, vector<2x32xf32>
      %cst_40 = arith.constant dense<0.000000e+00> : vector<2x32xf32>
      %21 = tpu.matmul %20, %2, %cst_40 {dimension_numbers = #tpu.dot_dimension_numbers<[1], [0], [0], [1], [0, 0, 1, 1], [], []>} : vector<2x32xf32>, vector<32x32xf32>, vector<2x32xf32> -> vector<2x32xf32>
      %22 = vector.broadcast %3 : vector<1x32xf32> to vector<2x32xf32>
      %23 = arith.addf %21, %22 : vector<2x32xf32>
      %24 = vector.shape_cast %23 : vector<2x32xf32> to vector<2x1x32xf32>
      %25 = vector.broadcast %24 : vector<2x1x32xf32> to vector<2x16x32xf32>
      %26 = arith.addf %1, %25 : vector<2x16x32xf32>
      %27 = math.tanh %26 : vector<2x16x32xf32>
      %28 = vector.shape_cast %4 : vector<1x32xf32> to vector<1x1x32xf32>
      %29 = vector.broadcast %28 : vector<1x1x32xf32> to vector<2x16x32xf32>
      %30 = arith.mulf %27, %29 : vector<2x16x32xf32>
      %cst_41 = arith.constant dense<0.000000e+00> : vector<2x16xf32>
      %31 = vector.multi_reduction <add>, %30, %cst_41 [2] : vector<2x16x32xf32> to vector<2x16xf32>
      %32 = vector.broadcast %5 : vector<1x1xf32> to vector<2x16xf32>
      %33 = arith.addf %31, %32 : vector<2x16xf32>
      %cst_42 = arith.constant dense<0xFF800000> : vector<2xf32>
      %34 = vector.multi_reduction <maximumf>, %33, %cst_42 [1] : vector<2x16xf32> to vector<2xf32>
      %35 = vector.shape_cast %34 : vector<2xf32> to vector<2x1xf32>
      %36 = vector.broadcast %35 : vector<2x1xf32> to vector<2x16xf32>
      %37 = arith.subf %33, %36 : vector<2x16xf32>
      %38 = math.exp %37 : vector<2x16xf32>
      %cst_43 = arith.constant dense<0.000000e+00> : vector<2xf32>
      %39 = vector.multi_reduction <add>, %38, %cst_43 [1] : vector<2x16xf32> to vector<2xf32>
      %40 = vector.shape_cast %39 : vector<2xf32> to vector<2x1xf32>
      %41 = vector.broadcast %40 : vector<2x1xf32> to vector<2x16xf32>
      %42 = arith.divf %38, %41 : vector<2x16xf32>
      %43 = vector.shape_cast %42 : vector<2x16xf32> to vector<2x16x1xf32>
      %44 = vector.broadcast %43 : vector<2x16x1xf32> to vector<2x16x4xf32>
      %45 = arith.mulf %0, %44 : vector<2x16x4xf32>
      %cst_44 = arith.constant dense<0.000000e+00> : vector<2x4xf32>
      %46 = vector.multi_reduction <add>, %45, %cst_44 [1] : vector<2x16x4xf32> to vector<2x4xf32>
      %cst_45 = arith.constant dense<0.000000e+00> : vector<2x4xf32>
      %47 = tpu.matmul %46, %6, %cst_45 {dimension_numbers = #tpu.dot_dimension_numbers<[1], [0], [0], [1], [0, 0, 1, 1], [], []>} : vector<2x4xf32>, vector<4x4xf32>, vector<2x4xf32> -> vector<2x4xf32>
      %48 = vector.broadcast %7 : vector<1x4xf32> to vector<2x4xf32>
      %49 = arith.addf %47, %48 : vector<2x4xf32>
      %cst_46 = arith.constant 0.000000e+00 : f32
      %50 = vector.broadcast %cst_46 : f32 to vector<2x4xf32>
      %51 = arith.maximumf %49, %50 : vector<2x4xf32>
      %cst_47 = arith.constant dense<0.000000e+00> : vector<2x32xf32>
      %52 = tpu.matmul %51, %8, %cst_47 {dimension_numbers = #tpu.dot_dimension_numbers<[1], [0], [0], [1], [0, 0, 1, 1], [], []>} : vector<2x4xf32>, vector<4x32xf32>, vector<2x32xf32> -> vector<2x32xf32>
      %53 = arith.index_cast %arg24 : i32 to index
      %c0_48 = arith.constant 0 : index
      %c0_49 = arith.constant 0 : index
      %54 = vector.load %arg3[%53, %c0_48, %c0_49] : memref<8x2x32xf32, #tpu.memory_space<vmem>>, vector<1x2x32xf32>
      %55 = vector.shape_cast %54 : vector<1x2x32xf32> to vector<2x32xf32>
      %56 = arith.addf %52, %55 : vector<2x32xf32>
      %cst_50 = arith.constant dense<0.000000e+00> : vector<2x32xf32>
      %57 = tpu.matmul %51, %9, %cst_50 {dimension_numbers = #tpu.dot_dimension_numbers<[1], [0], [0], [1], [0, 0, 1, 1], [], []>} : vector<2x4xf32>, vector<4x32xf32>, vector<2x32xf32> -> vector<2x32xf32>
      %58 = arith.index_cast %arg24 : i32 to index
      %c0_51 = arith.constant 0 : index
      %c0_52 = arith.constant 0 : index
      %59 = vector.load %arg4[%58, %c0_51, %c0_52] : memref<8x2x32xf32, #tpu.memory_space<vmem>>, vector<1x2x32xf32>
      %60 = vector.shape_cast %59 : vector<1x2x32xf32> to vector<2x32xf32>
      %61 = arith.addf %57, %60 : vector<2x32xf32>
      %cst_53 = arith.constant dense<0.000000e+00> : vector<2x32xf32>
      %62 = tpu.matmul %51, %10, %cst_53 {dimension_numbers = #tpu.dot_dimension_numbers<[1], [0], [0], [1], [0, 0, 1, 1], [], []>} : vector<2x4xf32>, vector<4x32xf32>, vector<2x32xf32> -> vector<2x32xf32>
      %63 = arith.index_cast %arg24 : i32 to index
      %c0_54 = arith.constant 0 : index
      %c0_55 = arith.constant 0 : index
      %64 = vector.load %arg5[%63, %c0_54, %c0_55] : memref<8x2x32xf32, #tpu.memory_space<vmem>>, vector<1x2x32xf32>
      %65 = vector.shape_cast %64 : vector<1x2x32xf32> to vector<2x32xf32>
      %66 = arith.addf %62, %65 : vector<2x32xf32>
      %cst_56 = arith.constant dense<0.000000e+00> : vector<2x32xf32>
      %67 = tpu.matmul %20, %11, %cst_56 {dimension_numbers = #tpu.dot_dimension_numbers<[1], [0], [0], [1], [0, 0, 1, 1], [], []>} : vector<2x32xf32>, vector<32x32xf32>, vector<2x32xf32> -> vector<2x32xf32>
      %68 = vector.broadcast %14 : vector<1x32xf32> to vector<2x32xf32>
      %69 = arith.addf %67, %68 : vector<2x32xf32>
      %cst_57 = arith.constant dense<0.000000e+00> : vector<2x32xf32>
      %70 = tpu.matmul %20, %12, %cst_57 {dimension_numbers = #tpu.dot_dimension_numbers<[1], [0], [0], [1], [0, 0, 1, 1], [], []>} : vector<2x32xf32>, vector<32x32xf32>, vector<2x32xf32> -> vector<2x32xf32>
      %71 = vector.broadcast %15 : vector<1x32xf32> to vector<2x32xf32>
      %72 = arith.addf %70, %71 : vector<2x32xf32>
      %cst_58 = arith.constant dense<0.000000e+00> : vector<2x32xf32>
      %73 = tpu.matmul %20, %13, %cst_58 {dimension_numbers = #tpu.dot_dimension_numbers<[1], [0], [0], [1], [0, 0, 1, 1], [], []>} : vector<2x32xf32>, vector<32x32xf32>, vector<2x32xf32> -> vector<2x32xf32>
      %74 = vector.broadcast %16 : vector<1x32xf32> to vector<2x32xf32>
      %75 = arith.addf %73, %74 : vector<2x32xf32>
      %76 = arith.addf %56, %69 : vector<2x32xf32>
      %77 = arith.negf %76 : vector<2x32xf32>
      %78 = math.exp %77 : vector<2x32xf32>
      %cst_59 = arith.constant 1.000000e+00 : f32
      %79 = vector.broadcast %cst_59 : f32 to vector<2x32xf32>
      %80 = arith.addf %79, %78 : vector<2x32xf32>
      %81 = arith.divf %79, %80 : vector<2x32xf32>
      %82 = arith.addf %61, %72 : vector<2x32xf32>
      %83 = arith.negf %82 : vector<2x32xf32>
      %84 = math.exp %83 : vector<2x32xf32>
      %cst_60 = arith.constant 1.000000e+00 : f32
      %85 = vector.broadcast %cst_60 : f32 to vector<2x32xf32>
      %86 = arith.addf %85, %84 : vector<2x32xf32>
      %87 = arith.divf %85, %86 : vector<2x32xf32>
      %88 = arith.mulf %81, %75 : vector<2x32xf32>
      %89 = arith.addf %66, %88 : vector<2x32xf32>
      %90 = math.tanh %89 : vector<2x32xf32>
      %cst_61 = arith.constant 1.000000e+00 : f32
      %91 = vector.broadcast %cst_61 : f32 to vector<2x32xf32>
      %92 = arith.subf %91, %87 : vector<2x32xf32>
      %93 = arith.mulf %92, %90 : vector<2x32xf32>
      %94 = arith.mulf %87, %20 : vector<2x32xf32>
      %95 = arith.addf %93, %94 : vector<2x32xf32>
      %c0_62 = arith.constant 0 : index
      %c0_63 = arith.constant 0 : index
      %96 = vector.load %arg23[%c0_62, %c0_63] : memref<2x32xf32, #tpu.memory_space<vmem>>, vector<2x32xf32>
      tpu.vector_store %arg23[%c0_62, %c0_63], %95 {strides = array<i32>} : memref<2x32xf32, #tpu.memory_space<vmem>>, vector<2x32xf32>,
      %97 = arith.index_cast %arg24 : i32 to index
      %c0_64 = arith.constant 0 : index
      %c0_65 = arith.constant 0 : index
      %98 = vector.load %arg21[%97, %c0_64, %c0_65] : memref<8x2x32xf32, #tpu.memory_space<vmem>>, vector<1x2x32xf32>
      %99 = vector.shape_cast %98 : vector<1x2x32xf32> to vector<2x32xf32>
      %100 = vector.shape_cast %95 : vector<2x32xf32> to vector<1x2x32xf32>
      tpu.vector_store %arg21[%97, %c0_64, %c0_65], %100 {strides = array<i32>} : memref<8x2x32xf32, #tpu.memory_space<vmem>>, vector<1x2x32xf32>,
      %101 = arith.index_cast %arg24 : i32 to index
      %c0_66 = arith.constant 0 : index
      %c0_67 = arith.constant 0 : index
      %102 = vector.load %arg22[%101, %c0_66, %c0_67] : memref<8x2x16xf32, #tpu.memory_space<vmem>>, vector<1x2x16xf32>
      %103 = vector.shape_cast %102 : vector<1x2x16xf32> to vector<2x16xf32>
      %104 = vector.shape_cast %42 : vector<2x16xf32> to vector<1x2x16xf32>
      tpu.vector_store %arg22[%101, %c0_66, %c0_67], %104 {strides = array<i32>} : memref<8x2x16xf32, #tpu.memory_space<vmem>>, vector<1x2x16xf32>,
    }
    %c8_i32_37 = arith.constant 8 : i32
    return
  }
  func.func @transform_0(%arg0: i32) -> (i32, i32, i32) {
    %c0_i32 = arith.constant 0 : i32
    %c0_i32_0 = arith.constant 0 : i32
    %c0_i32_1 = arith.constant 0 : i32
    return %arg0, %c0_i32, %c0_i32_0 : i32, i32, i32
  }
  func.func @transform_1(%arg0: i32) -> (i32, i32, i32) {
    %c0_i32 = arith.constant 0 : i32
    %c0_i32_0 = arith.constant 0 : i32
    %c0_i32_1 = arith.constant 0 : i32
    return %arg0, %c0_i32, %c0_i32_0 : i32, i32, i32
  }
  func.func @transform_2(%arg0: i32) -> (i32, i32, i32) {
    %c0_i32 = arith.constant 0 : i32
    %c0_i32_0 = arith.constant 0 : i32
    %c0_i32_1 = arith.constant 0 : i32
    return %c0_i32, %arg0, %c0_i32_0 : i32, i32, i32
  }
  func.func @transform_3(%arg0: i32) -> (i32, i32, i32) {
    %c0_i32 = arith.constant 0 : i32
    %c0_i32_0 = arith.constant 0 : i32
    %c0_i32_1 = arith.constant 0 : i32
    return %c0_i32, %arg0, %c0_i32_0 : i32, i32, i32
  }
  func.func @transform_4(%arg0: i32) -> (i32, i32, i32) {
    %c0_i32 = arith.constant 0 : i32
    %c0_i32_0 = arith.constant 0 : i32
    %c0_i32_1 = arith.constant 0 : i32
    return %c0_i32, %arg0, %c0_i32_0 : i32, i32, i32
  }
  func.func @transform_5(%arg0: i32) -> (i32, i32) {
    %c0_i32 = arith.constant 0 : i32
    %c0_i32_0 = arith.constant 0 : i32
    %c0_i32_1 = arith.constant 0 : i32
    return %c0_i32, %c0_i32_0 : i32, i32
  }
  func.func @transform_6(%arg0: i32) -> (i32, i32) {
    %c0_i32 = arith.constant 0 : i32
    %c0_i32_0 = arith.constant 0 : i32
    %c0_i32_1 = arith.constant 0 : i32
    return %c0_i32, %c0_i32_0 : i32, i32
  }
  func.func @transform_7(%arg0: i32) -> (i32, i32) {
    %c0_i32 = arith.constant 0 : i32
    %c0_i32_0 = arith.constant 0 : i32
    %c0_i32_1 = arith.constant 0 : i32
    return %c0_i32, %c0_i32_0 : i32, i32
  }
  func.func @transform_8(%arg0: i32) -> (i32, i32) {
    %c0_i32 = arith.constant 0 : i32
    %c0_i32_0 = arith.constant 0 : i32
    %c0_i32_1 = arith.constant 0 : i32
    return %c0_i32, %c0_i32_0 : i32, i32
  }
  func.func @transform_9(%arg0: i32) -> (i32, i32) {
    %c0_i32 = arith.constant 0 : i32
    %c0_i32_0 = arith.constant 0 : i32
    %c0_i32_1 = arith.constant 0 : i32
    return %c0_i32, %c0_i32_0 : i32, i32
  }
  func.func @transform_10(%arg0: i32) -> (i32, i32) {
    %c0_i32 = arith.constant 0 : i32
    %c0_i32_0 = arith.constant 0 : i32
    %c0_i32_1 = arith.constant 0 : i32
    return %c0_i32, %c0_i32_0 : i32, i32
  }
  func.func @transform_11(%arg0: i32) -> (i32, i32) {
    %c0_i32 = arith.constant 0 : i32
    %c0_i32_0 = arith.constant 0 : i32
    %c0_i32_1 = arith.constant 0 : i32
    return %c0_i32, %c0_i32_0 : i32, i32
  }
  func.func @transform_12(%arg0: i32) -> (i32, i32) {
    %c0_i32 = arith.constant 0 : i32
    %c0_i32_0 = arith.constant 0 : i32
    %c0_i32_1 = arith.constant 0 : i32
    return %c0_i32, %c0_i32_0 : i32, i32
  }
  func.func @transform_13(%arg0: i32) -> (i32, i32) {
    %c0_i32 = arith.constant 0 : i32
    %c0_i32_0 = arith.constant 0 : i32
    %c0_i32_1 = arith.constant 0 : i32
    return %c0_i32, %c0_i32_0 : i32, i32
  }
  func.func @transform_14(%arg0: i32) -> (i32, i32) {
    %c0_i32 = arith.constant 0 : i32
    %c0_i32_0 = arith.constant 0 : i32
    %c0_i32_1 = arith.constant 0 : i32
    return %c0_i32, %c0_i32_0 : i32, i32
  }
  func.func @transform_15(%arg0: i32) -> (i32, i32) {
    %c0_i32 = arith.constant 0 : i32
    %c0_i32_0 = arith.constant 0 : i32
    %c0_i32_1 = arith.constant 0 : i32
    return %c0_i32, %c0_i32_0 : i32, i32
  }
  func.func @transform_16(%arg0: i32) -> (i32, i32) {
    %c0_i32 = arith.constant 0 : i32
    %c0_i32_0 = arith.constant 0 : i32
    %c0_i32_1 = arith.constant 0 : i32
    return %c0_i32, %c0_i32_0 : i32, i32
  }
  func.func @transform_17(%arg0: i32) -> (i32, i32) {
    %c0_i32 = arith.constant 0 : i32
    %c0_i32_0 = arith.constant 0 : i32
    %c0_i32_1 = arith.constant 0 : i32
    return %c0_i32, %c0_i32_0 : i32, i32
  }
  func.func @transform_18(%arg0: i32) -> (i32, i32) {
    %c0_i32 = arith.constant 0 : i32
    %c0_i32_0 = arith.constant 0 : i32
    %c0_i32_1 = arith.constant 0 : i32
    return %c0_i32, %c0_i32_0 : i32, i32
  }
  func.func @transform_19(%arg0: i32) -> (i32, i32) {
    %c0_i32 = arith.constant 0 : i32
    %c0_i32_0 = arith.constant 0 : i32
    %c0_i32_1 = arith.constant 0 : i32
    return %c0_i32, %c0_i32_0 : i32, i32
  }
  func.func @transform_20(%arg0: i32) -> (i32, i32, i32) {
    %c0_i32 = arith.constant 0 : i32
    %c0_i32_0 = arith.constant 0 : i32
    %c0_i32_1 = arith.constant 0 : i32
    return %c0_i32, %arg0, %c0_i32_0 : i32, i32, i32
  }
  func.func @transform_21(%arg0: i32) -> (i32, i32, i32) {
    %c0_i32 = arith.constant 0 : i32
    %c0_i32_0 = arith.constant 0 : i32
    %c0_i32_1 = arith.constant 0 : i32
    return %c0_i32, %arg0, %c0_i32_0 : i32, i32, i32
  }
}

</mosaic_0001>

<llo_original>
// kernel: tpu_custom_call.1
$region0: #{tpu_custom_call.1}
  #allocation0 [shape = 'u32[]', space=smem, size = 0x4, offset = 0x4, fixed_abs, tag = 'smem constant byte address 0x4 - core index']
  #allocation1 [shape = 'u32[144,128]{1,0:T(1,128)}', space=vmem, size = 0x12000, scoped, tag = 'internal scratch']
  #allocation2 [shape = 'f32[2,32]{1,0:T(2,128)}', space=vmem, size = 0x400, scoped, tag = 'scratch operand']
  #allocation3 [shape = 'f32[1,1]{1,0:T(1,128)S(1)}', space=vmem, size = 0x200, scoped, tag = 'scoped memory for tpu_custom_call.1']
  %s0 = inlined_call_operand.vmem [shape: f32[2,16,4], index: 0, kind: input, shape index: {}]
  %s1 = inlined_call_operand.vmem [shape: f32[2,16,32], index: 1, kind: input, shape index: {}]
  %s2 = inlined_call_operand.hbm [shape: f32[8,2,32], index: 2, kind: input, shape index: {}]
  %s3 = inlined_call_operand.hbm [shape: f32[8,2,32], index: 3, kind: input, shape index: {}]
  %s4 = inlined_call_operand.hbm [shape: f32[8,2,32], index: 4, kind: input, shape index: {}]
  %s5 = inlined_call_operand.hbm [shape: f32[32,32], index: 5, kind: input, shape index: {}]
  %s6 = inlined_call_operand.hbm [shape: f32[1,32], index: 6, kind: input, shape index: {}]
  %s7 = inlined_call_operand.hbm [shape: f32[1,32], index: 7, kind: input, shape index: {}]
  %s8 = inlined_call_operand.<no memory space> [shape: f32[1,1], index: 8, kind: input, shape index: {}]
  %s9 = inlined_call_operand.hbm [shape: f32[4,4], index: 9, kind: input, shape index: {}]
  %s10 = inlined_call_operand.hbm [shape: f32[1,4], index: 10, kind: input, shape index: {}]
  %s11 = inlined_call_operand.hbm [shape: f32[4,32], index: 11, kind: input, shape index: {}]
  %s12 = inlined_call_operand.hbm [shape: f32[4,32], index: 12, kind: input, shape index: {}]
  %s13 = inlined_call_operand.hbm [shape: f32[4,32], index: 13, kind: input, shape index: {}]
  %s14 = inlined_call_operand.vmem [shape: f32[32,32], index: 14, kind: input, shape index: {}]
  %s15 = inlined_call_operand.vmem [shape: f32[32,32], index: 15, kind: input, shape index: {}]
  %s16 = inlined_call_operand.hbm [shape: f32[32,32], index: 16, kind: input, shape index: {}]
  %s17 = inlined_call_operand.vmem [shape: f32[1,32], index: 17, kind: input, shape index: {}]
  %s18 = inlined_call_operand.vmem [shape: f32[1,32], index: 18, kind: input, shape index: {}]
  %s19 = inlined_call_operand.vmem [shape: f32[1,32], index: 19, kind: input, shape index: {}]
  %s20 = inlined_call_operand.hbm [shape: f32[8,2,32], index: 20, kind: output, shape index: {0}]
  %s21 = inlined_call_operand.hbm [shape: f32[8,2,16], index: 21, kind: output, shape index: {1}]
  %22 = xla_tuple %s20, %s21
  %s23 = sld [smem:[#allocation0]]
  $region153: #{tpu_custom_call.1} parent=0
    _
  %s25 = ssub.s32 1, %s23
  %s26 = scalar_select 0, %s25, %s23
  %v27 = vstv %s8
  %28 = vst [vmem:[#allocation3] sm:$0x1] %v27
  $region1: #{tpu_custom_call.1} parent=0
    #allocation4 [shape = 'u8[8192]{0}', space=vmem, size = 0x2000, scoped, tag = 'input window, operand 2, single buffered']
    #allocation5 [shape = 's32[1]{0}', space=sflag, size = 0x4, scoped, tag = 'scoped memory for tpu_custom_call.1']
    #allocation6 [shape = 's32[1]{0}', space=sflag, size = 0x4, scoped, tag = 'scoped memory for tpu_custom_call.1']
    #allocation7 [shape = 'u8[8192]{0}', space=vmem, size = 0x2000, scoped, tag = 'input window, operand 3, single buffered']
    #allocation8 [shape = 's32[1]{0}', space=sflag, size = 0x4, scoped, tag = 'scoped memory for tpu_custom_call.1']
    #allocation9 [shape = 'u8[8192]{0}', space=vmem, size = 0x2000, scoped, tag = 'input window, operand 4, single buffered']
    #allocation10 [shape = 'u8[16384]{0}', space=vmem, size = 0x4000, scoped, tag = 'input window, operand 5, single buffered']
    #allocation11 [shape = 's32[1]{0}', space=sflag, size = 0x4, scoped, tag = 'scoped memory for tpu_custom_call.1']
    #allocation12 [shape = 'u8[512]{0}', space=vmem, size = 0x400, scoped, tag = 'input window, operand 6, single buffered']
    #allocation13 [shape = 'u8[512]{0}', space=vmem, size = 0x400, scoped, tag = 'input window, operand 7, single buffered']
    #allocation14 [shape = 's32[1]{0}', space=sflag, size = 0x4, scoped, tag = 'scoped memory for tpu_custom_call.1']
    #allocation15 [shape = 'u8[2048]{0}', space=vmem, size = 0x800, scoped, tag = 'input window, operand 9, single buffered']
    #allocation16 [shape = 'u8[512]{0}', space=vmem, size = 0x400, scoped, tag = 'input window, operand 10, single buffered']
    #allocation17 [shape = 's32[1]{0}', space=sflag, size = 0x4, scoped, tag = 'scoped memory for tpu_custom_call.1']
    #allocation18 [shape = 'u8[2048]{0}', space=vmem, size = 0x800, scoped, tag = 'input window, operand 11, single buffered']
    #allocation19 [shape = 'u8[2048]{0}', space=vmem, size = 0x800, scoped, tag = 'input window, operand 12, single buffered']
    #allocation20 [shape = 's32[1]{0}', space=sflag, size = 0x4, scoped, tag = 'scoped memory for tpu_custom_call.1']
    #allocation21 [shape = 'u8[2048]{0}', space=vmem, size = 0x800, scoped, tag = 'input window, operand 13, single buffered']
    #allocation22 [shape = 'u8[16384]{0}', space=vmem, size = 0x4000, scoped, tag = 'input window, operand 16, single buffered']
    #allocation23 [shape = 's32[1]{0}', space=sflag, size = 0x4, scoped, tag = 'scoped memory for tpu_custom_call.1']
    #allocation24 [shape = 'u8[8192]{0}', space=vmem, size = 0x2000, scoped, tag = 'output window, operand 0, single buffered']
    #allocation25 [shape = 'u8[8192]{0}', space=vmem, size = 0x2000, scoped, tag = 'output window, operand 1, single buffered']
    #allocation26 [shape = 's32[1]{0}', space=sflag, size = 0x4, scoped, tag = 'scoped memory for tpu_custom_call.1']
    %29 = vsyncpa [#allocation5], 0
    %30 = vsyncpa [#allocation8], 0
    %31 = vsyncpa [#allocation11], 0
    %32 = vsyncpa [#allocation14], 0
    %33 = vsyncpa [#allocation17], 0
    %34 = vsyncpa [#allocation20], 0
    %35 = vsyncpa [#allocation23], 0
    %36 = vsyncpa [#allocation6], 0
    %37 = vsyncpa [#allocation26], 0
    // Predicated region
    $region2: #{tpu_custom_call.1} parent=1 // pred_check
      _
    $region3: #{tpu_custom_call.1} parent=1 // pred_check_branch
      %39 = sbr.rel (0) target = $region5
    $region4: #{tpu_custom_call.1} parent=1 // pred_region
      _
    $region5: #{tpu_custom_call.1} parent=1 // pred_fallthru
      _
    // Predicated region
    $region6: #{tpu_custom_call.1} parent=1 // pred_check
      _
    $region7: #{tpu_custom_call.1} parent=1 // pred_check_branch
      %41 = sbr.rel (0) target = $region9
    $region8: #{tpu_custom_call.1} parent=1 // pred_region
      _
    $region9: #{tpu_custom_call.1} parent=1 // pred_fallthru
      _
    // Predicated region
    $region10: #{tpu_custom_call.1} parent=1 // pred_check
      _
    $region11: #{tpu_custom_call.1} parent=1 // pred_check_branch
      %43 = sbr.rel (0) target = $region13
    $region12: #{tpu_custom_call.1} parent=1 // pred_region
      %s45 = ssub.s32 256, 256
      %46 = vsyncadd [#allocation5], %s45
      %s47 = sshll.u32 [#allocation4], 4
      %s48 = int_to_ptr.vmem [resolvable:$true] %s47
      %53 = dma.hbm_to_vmem [thread:$0]  %s2, 256, %s48, [#allocation5], 32, 32, 2
    $region13: #{tpu_custom_call.1} parent=1 // pred_fallthru
      _
    // Predicated region
    $region14: #{tpu_custom_call.1} parent=1 // pred_check
      _
    $region15: #{tpu_custom_call.1} parent=1 // pred_check_branch
      %55 = sbr.rel (0) target = $region17
    $region16: #{tpu_custom_call.1} parent=1 // pred_region
      %s57 = ssub.s32 256, 256
      %58 = vsyncadd [#allocation8], %s57
      %s59 = sshll.u32 [#allocation7], 4
      %s60 = int_to_ptr.vmem [resolvable:$true] %s59
      %65 = dma.hbm_to_vmem [thread:$0]  %s3, 256, %s60, [#allocation8], 32, 32, 2
    $region17: #{tpu_custom_call.1} parent=1 // pred_fallthru
      _
    // Predicated region
    $region18: #{tpu_custom_call.1} parent=1 // pred_check
      _
    $region19: #{tpu_custom_call.1} parent=1 // pred_check_branch
      %67 = sbr.rel (0) target = $region21
    $region20: #{tpu_custom_call.1} parent=1 // pred_region
      %s69 = ssub.s32 256, 256
      %70 = vsyncadd [#allocation8], %s69
      %s71 = sshll.u32 [#allocation9], 4
      %s72 = int_to_ptr.vmem [resolvable:$true] %s71
      %77 = dma.hbm_to_vmem [thread:$0]  %s4, 256, %s72, [#allocation8], 32, 32, 2
    $region21: #{tpu_custom_call.1} parent=1 // pred_fallthru
      _
    // Predicated region
    $region22: #{tpu_custom_call.1} parent=1 // pred_check
      _
    $region23: #{tpu_custom_call.1} parent=1 // pred_check_branch
      %79 = sbr.rel (0) target = $region25
    $region24: #{tpu_custom_call.1} parent=1 // pred_region
      %s81 = ssub.s32 512, 512
      %82 = vsyncadd [#allocation11], %s81
      %s83 = sshll.u32 [#allocation10], 4
      %s84 = int_to_ptr.vmem [resolvable:$true] %s83
      %89 = dma.hbm_to_vmem [thread:$0]  %s5, 512, %s84, [#allocation11], 128, 128, 8
    $region25: #{tpu_custom_call.1} parent=1 // pred_fallthru
      _
    // Predicated region
    $region26: #{tpu_custom_call.1} parent=1 // pred_check
      _
    $region27: #{tpu_custom_call.1} parent=1 // pred_check_branch
      %91 = sbr.rel (0) target = $region29
    $region28: #{tpu_custom_call.1} parent=1 // pred_region
      %s93 = ssub.s32 16, 16
      %94 = vsyncadd [#allocation11], %s93
      %s96 = sshll.u32 [#allocation12], 4
      %s97 = int_to_ptr.vmem [resolvable:$true] %s96
      %99 = dma.hbm_to_vmem [thread:$0]  %s6, 16, %s97, [#allocation11]
    $region29: #{tpu_custom_call.1} parent=1 // pred_fallthru
      _
    // Predicated region
    $region30: #{tpu_custom_call.1} parent=1 // pred_check
      _
    $region31: #{tpu_custom_call.1} parent=1 // pred_check_branch
      %101 = sbr.rel (0) target = $region33
    $region32: #{tpu_custom_call.1} parent=1 // pred_region
      %s103 = ssub.s32 16, 16
      %104 = vsyncadd [#allocation14], %s103
      %s106 = sshll.u32 [#allocation13], 4
      %s107 = int_to_ptr.vmem [resolvable:$true] %s106
      %109 = dma.hbm_to_vmem [thread:$0]  %s7, 16, %s107, [#allocation14]
    $region33: #{tpu_custom_call.1} parent=1 // pred_fallthru
      _
    // Predicated region
    $region34: #{tpu_custom_call.1} parent=1 // pred_check
      _
    $region35: #{tpu_custom_call.1} parent=1 // pred_check_branch
      %111 = sbr.rel (0) target = $region37
    $region36: #{tpu_custom_call.1} parent=1 // pred_region
      _
    $region37: #{tpu_custom_call.1} parent=1 // pred_fallthru
      _
    // Predicated region
    $region38: #{tpu_custom_call.1} parent=1 // pred_check
      _
    $region39: #{tpu_custom_call.1} parent=1 // pred_check_branch
      %113 = sbr.rel (0) target = $region41
    $region40: #{tpu_custom_call.1} parent=1 // pred_region
      %s115 = ssub.s32 64, 64
      %116 = vsyncadd [#allocation14], %s115
      %s118 = sshll.u32 [#allocation15], 4
      %s119 = int_to_ptr.vmem [resolvable:$true] %s118
      %121 = dma.hbm_to_vmem [thread:$0]  %s9, 64, %s119, [#allocation14]
    $region41: #{tpu_custom_call.1} parent=1 // pred_fallthru
      _
    // Predicated region
    $region42: #{tpu_custom_call.1} parent=1 // pred_check
      _
    $region43: #{tpu_custom_call.1} parent=1 // pred_check_branch
      %123 = sbr.rel (0) target = $region45
    $region44: #{tpu_custom_call.1} parent=1 // pred_region
      %s125 = ssub.s32 16, 16
      %126 = vsyncadd [#allocation17], %s125
      %s128 = sshll.u32 [#allocation16], 4
      %s129 = int_to_ptr.vmem [resolvable:$true] %s128
      %131 = dma.hbm_to_vmem [thread:$0]  %s10, 16, %s129, [#allocation17]
    $region45: #{tpu_custom_call.1} parent=1 // pred_fallthru
      _
    // Predicated region
    $region46: #{tpu_custom_call.1} parent=1 // pred_check
      _
    $region47: #{tpu_custom_call.1} parent=1 // pred_check_branch
      %133 = sbr.rel (0) target = $region49
    $region48: #{tpu_custom_call.1} parent=1 // pred_region
      %s135 = ssub.s32 64, 64
      %136 = vsyncadd [#allocation17], %s135
      %s138 = sshll.u32 [#allocation18], 4
      %s139 = int_to_ptr.vmem [resolvable:$true] %s138
      %141 = dma.hbm_to_vmem [thread:$0]  %s11, 64, %s139, [#allocation17]
    $region49: #{tpu_custom_call.1} parent=1 // pred_fallthru
      _
    // Predicated region
    $region50: #{tpu_custom_call.1} parent=1 // pred_check
      _
    $region51: #{tpu_custom_call.1} parent=1 // pred_check_branch
      %143 = sbr.rel (0) target = $region53
    $region52: #{tpu_custom_call.1} parent=1 // pred_region
      %s145 = ssub.s32 64, 64
      %146 = vsyncadd [#allocation20], %s145
      %s148 = sshll.u32 [#allocation19], 4
      %s149 = int_to_ptr.vmem [resolvable:$true] %s148
      %151 = dma.hbm_to_vmem [thread:$0]  %s12, 64, %s149, [#allocation20]
    $region53: #{tpu_custom_call.1} parent=1 // pred_fallthru
      _
    // Predicated region
    $region54: #{tpu_custom_call.1} parent=1 // pred_check
      _
    $region55: #{tpu_custom_call.1} parent=1 // pred_check_branch
      %153 = sbr.rel (0) target = $region57
    $region56: #{tpu_custom_call.1} parent=1 // pred_region
      %s155 = ssub.s32 64, 64
      %156 = vsyncadd [#allocation20], %s155
      %s158 = sshll.u32 [#allocation21], 4
      %s159 = int_to_ptr.vmem [resolvable:$true] %s158
      %161 = dma.hbm_to_vmem [thread:$0]  %s13, 64, %s159, [#allocation20]
    $region57: #{tpu_custom_call.1} parent=1 // pred_fallthru
      _
    // Predicated region
    $region58: #{tpu_custom_call.1} parent=1 // pred_check
      _
    $region59: #{tpu_custom_call.1} parent=1 // pred_check_branch
      %163 = sbr.rel (0) target = $region61
    $region60: #{tpu_custom_call.1} parent=1 // pred_region
      _
    $region61: #{tpu_custom_call.1} parent=1 // pred_fallthru
      _
    // Predicated region
    $region62: #{tpu_custom_call.1} parent=1 // pred_check
      _
    $region63: #{tpu_custom_call.1} parent=1 // pred_check_branch
      %165 = sbr.rel (0) target = $region65
    $region64: #{tpu_custom_call.1} parent=1 // pred_region
      _
    $region65: #{tpu_custom_call.1} parent=1 // pred_fallthru
      _
    // Predicated region
    $region66: #{tpu_custom_call.1} parent=1 // pred_check
      _
    $region67: #{tpu_custom_call.1} parent=1 // pred_check_branch
      %167 = sbr.rel (0) target = $region69
    $region68: #{tpu_custom_call.1} parent=1 // pred_region
      %s169 = ssub.s32 512, 512
      %170 = vsyncadd [#allocation23], %s169
      %s171 = sshll.u32 [#allocation22], 4
      %s172 = int_to_ptr.vmem [resolvable:$true] %s171
      %177 = dma.hbm_to_vmem [thread:$0]  %s16, 512, %s172, [#allocation23], 128, 128, 8
    $region69: #{tpu_custom_call.1} parent=1 // pred_fallthru
      _
    // Predicated region
    $region70: #{tpu_custom_call.1} parent=1 // pred_check
      _
    $region71: #{tpu_custom_call.1} parent=1 // pred_check_branch
      %179 = sbr.rel (0) target = $region73
    $region72: #{tpu_custom_call.1} parent=1 // pred_region
      _
    $region73: #{tpu_custom_call.1} parent=1 // pred_fallthru
      _
    // Predicated region
    $region74: #{tpu_custom_call.1} parent=1 // pred_check
      _
    $region75: #{tpu_custom_call.1} parent=1 // pred_check_branch
      %181 = sbr.rel (0) target = $region77
    $region76: #{tpu_custom_call.1} parent=1 // pred_region
      _
    $region77: #{tpu_custom_call.1} parent=1 // pred_fallthru
      _
    // Predicated region
    $region78: #{tpu_custom_call.1} parent=1 // pred_check
      _
    $region79: #{tpu_custom_call.1} parent=1 // pred_check_branch
      %183 = sbr.rel (0) target = $region81
    $region80: #{tpu_custom_call.1} parent=1 // pred_region
      _
    $region81: #{tpu_custom_call.1} parent=1 // pred_fallthru
      _
    // Predicated region
    $region82: #{tpu_custom_call.1} parent=1 // pred_check
      _
    $region83: #{tpu_custom_call.1} parent=1 // pred_check_branch
      %185 = sbr.rel (0) target = $region85
    $region84: #{tpu_custom_call.1} parent=1 // pred_region
      %186 = dma.done [#allocation5], 256
    $region85: #{tpu_custom_call.1} parent=1 // pred_fallthru
      _
    // Predicated region
    $region86: #{tpu_custom_call.1} parent=1 // pred_check
      _
    $region87: #{tpu_custom_call.1} parent=1 // pred_check_branch
      %188 = sbr.rel (0) target = $region89
    $region88: #{tpu_custom_call.1} parent=1 // pred_region
      %189 = dma.done [#allocation8], 256
    $region89: #{tpu_custom_call.1} parent=1 // pred_fallthru
      _
    // Predicated region
    $region90: #{tpu_custom_call.1} parent=1 // pred_check
      _
    $region91: #{tpu_custom_call.1} parent=1 // pred_check_branch
      %191 = sbr.rel (0) target = $region93
    $region92: #{tpu_custom_call.1} parent=1 // pred_region
      %192 = dma.done [#allocation8], 256
    $region93: #{tpu_custom_call.1} parent=1 // pred_fallthru
      _
    // Predicated region
    $region94: #{tpu_custom_call.1} parent=1 // pred_check
      _
    $region95: #{tpu_custom_call.1} parent=1 // pred_check_branch
      %194 = sbr.rel (0) target = $region97
    $region96: #{tpu_custom_call.1} parent=1 // pred_region
      %195 = dma.done [#allocation11], 512
    $region97: #{tpu_custom_call.1} parent=1 // pred_fallthru
      _
    // Predicated region
    $region98: #{tpu_custom_call.1} parent=1 // pred_check
      _
    $region99: #{tpu_custom_call.1} parent=1 // pred_check_branch
      %197 = sbr.rel (0) target = $region101
    $region100: #{tpu_custom_call.1} parent=1 // pred_region
      %198 = dma.done [#allocation11], 16
    $region101: #{tpu_custom_call.1} parent=1 // pred_fallthru
      _
    // Predicated region
    $region102: #{tpu_custom_call.1} parent=1 // pred_check
      _
    $region103: #{tpu_custom_call.1} parent=1 // pred_check_branch
      %200 = sbr.rel (0) target = $region105
    $region104: #{tpu_custom_call.1} parent=1 // pred_region
      %201 = dma.done [#allocation14], 16
    $region105: #{tpu_custom_call.1} parent=1 // pred_fallthru
      _
    // Predicated region
    $region106: #{tpu_custom_call.1} parent=1 // pred_check
      _
    $region107: #{tpu_custom_call.1} parent=1 // pred_check_branch
      %203 = sbr.rel (0) target = $region109
    $region108: #{tpu_custom_call.1} parent=1 // pred_region
      %204 = dma.done [#allocation14], 64
    $region109: #{tpu_custom_call.1} parent=1 // pred_fallthru
      _
    // Predicated region
    $region110: #{tpu_custom_call.1} parent=1 // pred_check
      _
    $region111: #{tpu_custom_call.1} parent=1 // pred_check_branch
      %206 = sbr.rel (0) target = $region113
    $region112: #{tpu_custom_call.1} parent=1 // pred_region
      %207 = dma.done [#allocation17], 16
    $region113: #{tpu_custom_call.1} parent=1 // pred_fallthru
      _
    // Predicated region
    $region114: #{tpu_custom_call.1} parent=1 // pred_check
      _
    $region115: #{tpu_custom_call.1} parent=1 // pred_check_branch
      %209 = sbr.rel (0) target = $region117
    $region116: #{tpu_custom_call.1} parent=1 // pred_region
      %210 = dma.done [#allocation17], 64
    $region117: #{tpu_custom_call.1} parent=1 // pred_fallthru
      _
    // Predicated region
    $region118: #{tpu_custom_call.1} parent=1 // pred_check
      _
    $region119: #{tpu_custom_call.1} parent=1 // pred_check_branch
      %212 = sbr.rel (0) target = $region121
    $region120: #{tpu_custom_call.1} parent=1 // pred_region
      %213 = dma.done [#allocation20], 64
    $region121: #{tpu_custom_call.1} parent=1 // pred_fallthru
      _
    // Predicated region
    $region122: #{tpu_custom_call.1} parent=1 // pred_check
      _
    $region123: #{tpu_custom_call.1} parent=1 // pred_check_branch
      %215 = sbr.rel (0) target = $region125
    $region124: #{tpu_custom_call.1} parent=1 // pred_region
      %216 = dma.done [#allocation20], 64
    $region125: #{tpu_custom_call.1} parent=1 // pred_fallthru
      _
    // Predicated region
    $region126: #{tpu_custom_call.1} parent=1 // pred_check
      _
    $region127: #{tpu_custom_call.1} parent=1 // pred_check_branch
      %218 = sbr.rel (0) target = $region129
    $region128: #{tpu_custom_call.1} parent=1 // pred_region
      %219 = dma.done [#allocation23], 512
    $region129: #{tpu_custom_call.1} parent=1 // pred_fallthru
      _
    %v220 = vld [vmem:[%s0] sm:$0xff]
    %v221 = vld [vmem:[%s0 + $0x8] sm:$0xff]
    %v222 = vld [vmem:[%s0 + $0x10] sm:$0xff]
    %v223 = vld [vmem:[%s0 + $0x18] sm:$0xff]
    %v224 = vld [vmem:[%s1] sm:$0xff]
    %v225 = vld [vmem:[%s1 + $0x8] sm:$0xff]
    %v226 = vld [vmem:[%s1 + $0x10] sm:$0xff]
    %v227 = vld [vmem:[%s1 + $0x18] sm:$0xff]
    %v228 = vld [vmem:[#allocation10] sm:$0xff]
    %v229 = vld [vmem:[#allocation10 + $0x8] sm:$0xff]
    %v230 = vld [vmem:[#allocation10 + $0x10] sm:$0xff]
    %v231 = vld [vmem:[#allocation10 + $0x18] sm:$0xff]
    %v232 = vld [vmem:[#allocation12] sm:$0x1]
    %v233 = vld [vmem:[#allocation13] sm:$0x1]
    %v234 = vld [vmem:[#allocation3] sm:$0x1]
    %v235 = vld [vmem:[#allocation15] sm:$0xf]
    %v236 = vld [vmem:[#allocation16] sm:$0x1]
    %v237 = vld [vmem:[#allocation18] sm:$0xf]
    %v238 = vld [vmem:[#allocation19] sm:$0xf]
    %v239 = vld [vmem:[#allocation21] sm:$0xf]
    %v240 = vld [vmem:[%s14] sm:$0xff]
    %v241 = vld [vmem:[%s14 + $0x8] sm:$0xff]
    %v242 = vld [vmem:[%s14 + $0x10] sm:$0xff]
    %v243 = vld [vmem:[%s14 + $0x18] sm:$0xff]
    %v244 = vld [vmem:[%s15] sm:$0xff]
    %v245 = vld [vmem:[%s15 + $0x8] sm:$0xff]
    %v246 = vld [vmem:[%s15 + $0x10] sm:$0xff]
    %v247 = vld [vmem:[%s15 + $0x18] sm:$0xff]
    %v248 = vld [vmem:[#allocation22] sm:$0xff]
    %v249 = vld [vmem:[#allocation22 + $0x8] sm:$0xff]
    %v250 = vld [vmem:[#allocation22 + $0x10] sm:$0xff]
    %v251 = vld [vmem:[#allocation22 + $0x18] sm:$0xff]
    %v252 = vld [vmem:[%s17] sm:$0x1]
    %v253 = vld [vmem:[%s18] sm:$0x1]
    %v254 = vld [vmem:[%s19] sm:$0x1]
    %vm255 = vcmask 254976
    %256 = vst.msk [vmem:[#allocation2] sm:$0x3] %vm255, 0.0
    loop: start=0, step=1, limit=8
    $region130: #{tpu_custom_call.1} parent=1 // loop_pre_header
      _
    $region131: #{tpu_custom_call.1} parent=1 // loop_header
      %s258 = sphi 0, %s262
      %p259 = scmp.ge.s32.totalorder %s258, 8
    $region132: #{tpu_custom_call.1} parent=1 // loop_header_branch
      %261 = sbr.rel (%p259) target = $region136
    $region133: #{tpu_custom_call.1} parent=1 // loop_body
      %v263 = vld [vmem:[#allocation2] sm:$0x3]
      %v265 = vlaneseq
      %v266 = vshrl.u32 %v265, 7
      %v267 = vsub.s32 0, %v266
      %v268 = vrot.slane %v232, %v267
      %vm270 = vcmask 261120
      %v272 = vsel %vm270, %v263, 0
      %274 = vmatprep.subr.mxu0 0.0
      %275 = vmatpush1.msra.mxu0 %v228
      %276 = vmatprep.subr.mxu0 0.0
      %277 = vmatpush1.msra.mxu0 %v229
      %278 = vmatprep.subr.mxu0 0.0
      %279 = vmatpush1.msra.mxu0 %v230
      %280 = vmatprep.subr.mxu0 0.0
      %281 = vmatpush1.msra.mxu0 %v231
      %282 = vmatprep.subr.mxu0 0.0
      %283 = vmatpush1.msra.mxu0 0.0
      %284 = vmatprep.subr.mxu0 0.0
      %285 = vmatpush1.msra.mxu0 0.0
      %286 = vmatprep.subr.mxu0 0.0
      %287 = vmatpush1.msra.mxu0 0.0
      %288 = vmatprep.subr.mxu0 0.0
      %289 = vmatpush1.msra.mxu0 0.0
      %290 = vmatprep.subr.mxu0 0.0
      %291 = vmatpush1.msra.mxu0 0.0
      %292 = vmatprep.subr.mxu0 0.0
      %293 = vmatpush1.msra.mxu0 0.0
      %294 = vmatprep.subr.mxu0 0.0
      %295 = vmatpush1.msra.mxu0 0.0
      %296 = vmatprep.subr.mxu0 0.0
      %297 = vmatpush1.msra.mxu0 0.0
      %298 = vmatprep.subr.mxu0 0.0
      %299 = vmatpush1.msra.mxu0 0.0
      %300 = vmatprep.subr.mxu0 0.0
      %301 = vmatpush1.msra.mxu0 0.0
      %302 = vmatprep.subr.mxu0 0.0
      %303 = vmatpush1.msra.mxu0 0.0
      %304 = vmatprep.subr.mxu0 0.0
      %305 = vmatpush1.msra.mxu0 0.0
      %306 = vmatprep.subr.mxu0 0.0
      %307 = vmatpush1.msra.mxu0 0.0
      %308 = vmatprep.subr.mxu0 0.0
      %309 = vmatpush1.msra.mxu0 0.0
      %310 = vmatprep.subr.mxu0 0.0
      %311 = vmatpush1.msra.mxu0 0.0
      %312 = vmatprep.subr.mxu0 0.0
      %313 = vmatpush1.msra.mxu0 0.0
      %314 = vmatprep.subr.mxu0 0.0
      %315 = vmatpush1.msra.mxu0 0.0
      %316 = vmatprep.subr.mxu0 0.0
      %317 = vmatpush1.msra.mxu0 0.0
      %318 = vmatprep.subr.mxu0 0.0
      %319 = vmatpush1.msra.mxu0 0.0
      %320 = vmatprep.subr.mxu0 0.0
      %321 = vmatpush1.msra.mxu0 0.0
      %322 = vmatprep.subr.mxu0 0.0
      %323 = vmatpush1.msra.mxu0 0.0
      %324 = vmatprep.subr.mxu0 0.0
      %325 = vmatpush1.msra.mxu0 0.0
      %326 = vmatprep.subr.mxu0 0.0
      %327 = vmatpush1.msra.mxu0 0.0
      %328 = vmatprep.subr.mxu0 0.0
      %329 = vmatpush1.msra.mxu0 0.0
      %330 = vmatprep.subr.mxu0 0.0
      %331 = vmatpush1.msra.mxu0 0.0
      %332 = vmatprep.subr.mxu0 0.0
      %333 = vmatpush1.msra.mxu0 0.0
      %334 = vmatprep.subr.mxu0 0.0
      %335 = vmatpush1.msra.mxu0 0.0
      %336 = vmatprep.subr.mxu0 0.0
      %337 = vmatpush1.msra.mxu0 0.0
      %338 = vmatprep.mubr.f32.mxu0 0.0
      %339 = vmatmul.mubr.f32.gmra.mrb[0].mxu0 %v272
      %v340 = vpop.f32.mrb[0].mxu0
      %v341 = vadd.f32 %v268, %v340
      %v342 = vpop.f32.mrb[0].mxu0
      %343 = vdwg.mxu0
      %v346 = vunpack.c.l.s4 1966171168
      %v347 = vunpack.c.0.s8 %v346
      %v348 = vlaneseq
      %v349 = vshrl.u32 %v348, 7
      %v350 = vsub.s32 %v347, %v349
      %v351 = vrot.slane %v341, %v350
      %v352 = vcombine.high %v351, %v351
      %v354 = vunpack.c.l.s4 1966171168
      %v355 = vunpack.c.0.s8 %v354
      %v356 = vlaneseq
      %v357 = vshrl.u32 %v356, 7
      %v358 = vsub.s32 %v355, %v357
      %v359 = vrot.slane %v351, %v358
      %v361 = vunpack.c.l.s4 1966171168
      %v362 = vunpack.c.0.s8 %v361
      %v363 = vlaneseq
      %v364 = vshrl.u32 %v363, 7
      %v365 = vsub.s32 %v362, %v364
      %v366 = vrot.slane %v352, %v365
      %v367 = vlaneseq
      %v368 = vshrl.u32 %v367, 7
      %v369 = vsub.s32 0, %v368
      %v370 = vrot.slane %v359, %v369
      %v371 = vlaneseq
      %v372 = vshrl.u32 %v371, 7
      %v373 = vsub.s32 0, %v372
      %v374 = vrot.slane %v366, %v373
      %v377 = vadd.f32 %v224, %v370
      %v378 = vadd.f32 %v225, %v370
      %v379 = vadd.f32 %v226, %v374
      %v380 = vadd.f32 %v227, %v374
      %v381 = vtanh.pop %v377
      %v382 = vtanh.pop %v378
      %v383 = vtanh.pop %v379
      %v384 = vtanh.pop %v380
      %v386 = vlaneseq
      %v387 = vshrl.u32 %v386, 7
      %v388 = vsub.s32 0, %v387
      %v389 = vrot.slane %v233, %v388
      %v391 = vmul.f32 %v381, %v389
      %v392 = vmul.f32 %v382, %v389
      %v393 = vmul.f32 %v383, %v389
      %v394 = vmul.f32 %v384, %v389
      %v395 = vsel %vm270, %v391, 0.0
      %396 = vadd.xlane.f32.xlu0 %v395
      %v397 = vpop.xlane.xlu0 %396
      %v398 = vsel %vm270, %v392, 0.0
      %399 = vadd.xlane.f32.xlu0 %v398
      %v400 = vpop.xlane.xlu0 %399
      %v401 = vsel %vm270, %v393, 0.0
      %402 = vadd.xlane.f32.xlu0 %v401
      %v403 = vpop.xlane.xlu0 %402
      %v404 = vsel %vm270, %v394, 0.0
      %405 = vadd.xlane.f32.xlu0 %v404
      %v406 = vpop.xlane.xlu0 %405
      %v408 = vlaneseq
      %v409 = vshrl.u32 %v408, 7
      %v410 = vsub.s32 0, %v409
      %v411 = vrot.slane %v234, %v410
      %412 = vset.pattern.permute.xlu0 0
      %413 = vperm.xlu0 %412, %v411
      %v414 = vpop.permute.xlu0 %413
      %v416 = vadd.f32 %v397, %v414
      %v417 = vadd.f32 %v400, %v414
      %v418 = vadd.f32 %v403, %v414
      %v419 = vadd.f32 %v406, %v414
      %v424 = vlaneseq
      %v425 = vand.u32 %v424, 127
      %v426 = vlaneseq
      %v427 = vshrl.u32 %v426, 7
      %v428 = vsub.s32 %v425, %v427
      %v429 = vrot.slane %v416, %v428
      %v430 = vadd.s32 %v425, 4294967288
      %v431 = vlaneseq
      %v432 = vshrl.u32 %v431, 7
      %v433 = vsub.s32 %v430, %v432
      %v434 = vrot.slane %v417, %v433
      %vm435 = vcmask 130112
      %v436 = vsel %vm435, %v434, %v429
      %v437 = vlaneseq
      %v438 = vshrl.u32 %v437, 7
      %v439 = vsub.s32 %v425, %v438
      %v440 = vrot.slane %v418, %v439
      %v441 = vlaneseq
      %v442 = vshrl.u32 %v441, 7
      %v443 = vsub.s32 %v430, %v442
      %v444 = vrot.slane %v419, %v443
      %v445 = vsel %vm435, %v444, %v440
      %vm446 = vcmask 1041409
      %v447 = vsel %vm446, %v445, %v436
      %vm449 = vcmask 123904
      %v450 = vsel %vm449, %v447, -inf
      %451 = vmax.xlane.f32.xlu0 %v450
      %v452 = vpop.xlane.xlu0 %451
      %v454 = vlaneseq
      %v455 = vshrl.u32 %v454, 7
      %v456 = vsub.s32 0, %v455
      %v457 = vrot.slane %v452, %v456
      %v458 = vlaneseq
      %v459 = vshrl.u32 %v458, 7
      %v460 = vsub.s32 1, %v459
      %v461 = vrot.slane %v452, %v460
      %v464 = vsub.f32 %v416, %v457
      %v465 = vsub.f32 %v417, %v457
      %v466 = vsub.f32 %v418, %v461
      %v467 = vsub.f32 %v419, %v461
      %v468 = vmul.f32 %v464, 1.442695
      %v469 = vpow.pop %v468
      %v470 = vmul.f32 %v465, 1.442695
      %v471 = vpow.pop %v470
      %v472 = vmul.f32 %v466, 1.442695
      %v473 = vpow.pop %v472
      %v474 = vmul.f32 %v467, 1.442695
      %v475 = vpow.pop %v474
      %480 = vset.pattern.permute.xlu0 0
      %481 = vperm.xlu0 %480, %v469
      %v482 = vpop.permute.xlu0 %481
      %483 = vset.pattern.permute.xlu0 0
      %484 = vperm.xlu0 %483, %v471
      %v485 = vpop.permute.xlu0 %484
      %486 = vset.pattern.permute.xlu0 0
      %487 = vperm.xlu0 %486, %v473
      %v488 = vpop.permute.xlu0 %487
      %489 = vset.pattern.permute.xlu0 0
      %490 = vperm.xlu0 %489, %v475
      %v491 = vpop.permute.xlu0 %490
      %v492 = vlaneseq
      %v493 = vshrl.u32 %v492, 7
      %v494 = vsub.s32 %v425, %v493
      %v495 = vrot.slane %v482, %v494
      %v496 = vlaneseq
      %v497 = vshrl.u32 %v496, 7
      %v498 = vsub.s32 %v430, %v497
      %v499 = vrot.slane %v485, %v498
      %v500 = vsel %vm435, %v499, %v495
      %v501 = vlaneseq
      %v502 = vshrl.u32 %v501, 7
      %v503 = vsub.s32 %v425, %v502
      %v504 = vrot.slane %v488, %v503
      %v505 = vlaneseq
      %v506 = vshrl.u32 %v505, 7
      %v507 = vsub.s32 %v430, %v506
      %v508 = vrot.slane %v491, %v507
      %v509 = vsel %vm435, %v508, %v504
      %v510 = vsel %vm446, %v509, %v500
      %v512 = vsel %vm449, %v510, 0.0
      %513 = vadd.xlane.f32.xlu0 %v512
      %v514 = vpop.xlane.xlu0 %513
      %v516 = vlaneseq
      %v517 = vshrl.u32 %v516, 7
      %v518 = vsub.s32 0, %v517
      %v519 = vrot.slane %v514, %v518
      %v520 = vlaneseq
      %v521 = vshrl.u32 %v520, 7
      %v522 = vsub.s32 1, %v521
      %v523 = vrot.slane %v514, %v522
      %v526 = vrcp.pop %v519
      %v527 = vmul.f32 %v469, %v526
      %v528 = vmul.f32 %v471, %v526
      %v529 = vrcp.pop %v523
      %v530 = vmul.f32 %v473, %v529
      %v531 = vmul.f32 %v475, %v529
      %533 = vset.pattern.permute.xlu0 0
      %534 = vperm.xlu0 %533, %v527
      %v535 = vpop.permute.xlu0 %534
      %538 = vset.pattern.permute.xlu0 0
      %539 = vperm.xlu0 %538, %v528
      %v540 = vpop.permute.xlu0 %539
      %543 = vset.pattern.permute.xlu0 0
      %544 = vperm.xlu0 %543, %v530
      %v545 = vpop.permute.xlu0 %544
      %548 = vset.pattern.permute.xlu0 0
      %549 = vperm.xlu0 %548, %v531
      %v550 = vpop.permute.xlu0 %549
      %v552 = vmul.f32 %v220, %v535
      %v553 = vmul.f32 %v221, %v540
      %v554 = vmul.f32 %v222, %v545
      %v555 = vmul.f32 %v223, %v550
      %vm556 = vcmask 31744
      %v557 = vsel %vm556, %v552, 0.0
      %v558 = vsel %vm556, %v553, 0.0
      %v559 = vadd.f32 %v557, %v558
      %v560 = vrot.slane %v559, 4
      %v561 = vadd.f32 %v559, %v560
      %v562 = vrot.slane %v561, 2
      %v563 = vadd.f32 %v561, %v562
      %v564 = vrot.slane %v563, 1
      %v565 = vadd.f32 %v563, %v564
      %v566 = vsel %vm556, %v554, 0.0
      %v567 = vsel %vm556, %v555, 0.0
      %v568 = vadd.f32 %v566, %v567
      %v569 = vrot.slane %v568, 4
      %v570 = vadd.f32 %v568, %v569
      %v571 = vrot.slane %v570, 2
      %v572 = vadd.f32 %v570, %v571
      %v573 = vrot.slane %v572, 1
      %v574 = vadd.f32 %v572, %v573
      %v576 = vlaneseq
      %v577 = vshrl.u32 %v576, 7
      %v578 = vsub.s32 0, %v577
      %v579 = vrot.slane %v236, %v578
      %v583 = vsel %vm446, %v574, %v565
      %v584 = vsel %vm556, %v583, 0
      %vm586 = vcmask 1043456
      %v588 = vsel %vm586, %v235, 0
      %590 = vmatprep.subr.mxu0 0.0
      %591 = vmatpush1.msra.mxu0 %v588
      %592 = vmatprep.subr.mxu0 0.0
      %593 = vmatpush1.msra.mxu0 0.0
      %594 = vmatprep.subr.mxu0 0.0
      %595 = vmatpush1.msra.mxu0 0.0
      %596 = vmatprep.subr.mxu0 0.0
      %597 = vmatpush1.msra.mxu0 0.0
      %598 = vmatprep.subr.mxu0 0.0
      %599 = vmatpush1.msra.mxu0 0.0
      %600 = vmatprep.subr.mxu0 0.0
      %601 = vmatpush1.msra.mxu0 0.0
      %602 = vmatprep.subr.mxu0 0.0
      %603 = vmatpush1.msra.mxu0 0.0
      %604 = vmatprep.subr.mxu0 0.0
      %605 = vmatpush1.msra.mxu0 0.0
      %606 = vmatprep.subr.mxu0 0.0
      %607 = vmatpush1.msra.mxu0 0.0
      %608 = vmatprep.subr.mxu0 0.0
      %609 = vmatpush1.msra.mxu0 0.0
      %610 = vmatprep.subr.mxu0 0.0
      %611 = vmatpush1.msra.mxu0 0.0
      %612 = vmatprep.subr.mxu0 0.0
      %613 = vmatpush1.msra.mxu0 0.0
      %614 = vmatprep.subr.mxu0 0.0
      %615 = vmatpush1.msra.mxu0 0.0
      %616 = vmatprep.subr.mxu0 0.0
      %617 = vmatpush1.msra.mxu0 0.0
      %618 = vmatprep.subr.mxu0 0.0
      %619 = vmatpush1.msra.mxu0 0.0
      %620 = vmatprep.subr.mxu0 0.0
      %621 = vmatpush1.msra.mxu0 0.0
      %622 = vmatprep.subr.mxu0 0.0
      %623 = vmatpush1.msra.mxu0 0.0
      %624 = vmatprep.subr.mxu0 0.0
      %625 = vmatpush1.msra.mxu0 0.0
      %626 = vmatprep.subr.mxu0 0.0
      %627 = vmatpush1.msra.mxu0 0.0
      %628 = vmatprep.subr.mxu0 0.0
      %629 = vmatpush1.msra.mxu0 0.0
      %630 = vmatprep.subr.mxu0 0.0
      %631 = vmatpush1.msra.mxu0 0.0
      %632 = vmatprep.subr.mxu0 0.0
      %633 = vmatpush1.msra.mxu0 0.0
      %634 = vmatprep.subr.mxu0 0.0
      %635 = vmatpush1.msra.mxu0 0.0
      %636 = vmatprep.subr.mxu0 0.0
      %637 = vmatpush1.msra.mxu0 0.0
      %638 = vmatprep.subr.mxu0 0.0
      %639 = vmatpush1.msra.mxu0 0.0
      %640 = vmatprep.subr.mxu0 0.0
      %641 = vmatpush1.msra.mxu0 0.0
      %642 = vmatprep.subr.mxu0 0.0
      %643 = vmatpush1.msra.mxu0 0.0
      %644 = vmatprep.subr.mxu0 0.0
      %645 = vmatpush1.msra.mxu0 0.0
      %646 = vmatprep.subr.mxu0 0.0
      %647 = vmatpush1.msra.mxu0 0.0
      %648 = vmatprep.subr.mxu0 0.0
      %649 = vmatpush1.msra.mxu0 0.0
      %650 = vmatprep.subr.mxu0 0.0
      %651 = vmatpush1.msra.mxu0 0.0
      %652 = vmatprep.subr.mxu0 0.0
      %653 = vmatpush1.msra.mxu0 0.0
      %654 = vmatprep.mubr.f32.mxu0 0.0
      %655 = vmatmul.mubr.f32.gmra.mrb[0].mxu0 %v584
      %v656 = vpop.f32.mrb[0].mxu0
      %v657 = vadd.f32 %v579, %v656
      %v658 = vpop.f32.mrb[0].mxu0
      %659 = vdwg.mxu0
      %v660 = vmax.f32 %v657, 0.0
      %s661 = smul.u32 %s258, 2
      %s662 = scalar_lea.vmem [#allocation4], %s661
      %v663 = vld [vmem:[%s662] sm:$0x3]
      %v665 = vsel %vm556, %v660, 0
      %v668 = vsel %vm586, %v237, 0
      %670 = vmatprep.subr.mxu0 0.0
      %671 = vmatpush1.msra.mxu0 %v668
      %672 = vmatprep.subr.mxu0 0.0
      %673 = vmatpush1.msra.mxu0 0.0
      %674 = vmatprep.subr.mxu0 0.0
      %675 = vmatpush1.msra.mxu0 0.0
      %676 = vmatprep.subr.mxu0 0.0
      %677 = vmatpush1.msra.mxu0 0.0
      %678 = vmatprep.subr.mxu0 0.0
      %679 = vmatpush1.msra.mxu0 0.0
      %680 = vmatprep.subr.mxu0 0.0
      %681 = vmatpush1.msra.mxu0 0.0
      %682 = vmatprep.subr.mxu0 0.0
      %683 = vmatpush1.msra.mxu0 0.0
      %684 = vmatprep.subr.mxu0 0.0
      %685 = vmatpush1.msra.mxu0 0.0
      %686 = vmatprep.subr.mxu0 0.0
      %687 = vmatpush1.msra.mxu0 0.0
      %688 = vmatprep.subr.mxu0 0.0
      %689 = vmatpush1.msra.mxu0 0.0
      %690 = vmatprep.subr.mxu0 0.0
      %691 = vmatpush1.msra.mxu0 0.0
      %692 = vmatprep.subr.mxu0 0.0
      %693 = vmatpush1.msra.mxu0 0.0
      %694 = vmatprep.subr.mxu0 0.0
      %695 = vmatpush1.msra.mxu0 0.0
      %696 = vmatprep.subr.mxu0 0.0
      %697 = vmatpush1.msra.mxu0 0.0
      %698 = vmatprep.subr.mxu0 0.0
      %699 = vmatpush1.msra.mxu0 0.0
      %700 = vmatprep.subr.mxu0 0.0
      %701 = vmatpush1.msra.mxu0 0.0
      %702 = vmatprep.subr.mxu0 0.0
      %703 = vmatpush1.msra.mxu0 0.0
      %704 = vmatprep.subr.mxu0 0.0
      %705 = vmatpush1.msra.mxu0 0.0
      %706 = vmatprep.subr.mxu0 0.0
      %707 = vmatpush1.msra.mxu0 0.0
      %708 = vmatprep.subr.mxu0 0.0
      %709 = vmatpush1.msra.mxu0 0.0
      %710 = vmatprep.subr.mxu0 0.0
      %711 = vmatpush1.msra.mxu0 0.0
      %712 = vmatprep.subr.mxu0 0.0
      %713 = vmatpush1.msra.mxu0 0.0
      %714 = vmatprep.subr.mxu0 0.0
      %715 = vmatpush1.msra.mxu0 0.0
      %716 = vmatprep.subr.mxu0 0.0
      %717 = vmatpush1.msra.mxu0 0.0
      %718 = vmatprep.subr.mxu0 0.0
      %719 = vmatpush1.msra.mxu0 0.0
      %720 = vmatprep.subr.mxu0 0.0
      %721 = vmatpush1.msra.mxu0 0.0
      %722 = vmatprep.subr.mxu0 0.0
      %723 = vmatpush1.msra.mxu0 0.0
      %724 = vmatprep.subr.mxu0 0.0
      %725 = vmatpush1.msra.mxu0 0.0
      %726 = vmatprep.subr.mxu0 0.0
      %727 = vmatpush1.msra.mxu0 0.0
      %728 = vmatprep.subr.mxu0 0.0
      %729 = vmatpush1.msra.mxu0 0.0
      %730 = vmatprep.subr.mxu0 0.0
      %731 = vmatpush1.msra.mxu0 0.0
      %732 = vmatprep.subr.mxu0 0.0
      %733 = vmatpush1.msra.mxu0 0.0
      %734 = vmatprep.mubr.f32.mxu0 0.0
      %735 = vmatmul.mubr.f32.gmra.mrb[0].mxu0 %v665
      %v736 = vpop.f32.mrb[0].mxu0
      %v737 = vadd.f32 %v663, %v736
      %v738 = vpop.f32.mrb[0].mxu0
      %739 = vdwg.mxu0
      %s740 = scalar_lea.vmem [#allocation7], %s661
      %v741 = vld [vmem:[%s740] sm:$0x3]
      %v743 = vsel %vm586, %v238, 0
      %745 = vmatprep.subr.mxu0 0.0
      %746 = vmatpush1.msra.mxu0 %v743
      %747 = vmatprep.subr.mxu0 0.0
      %748 = vmatpush1.msra.mxu0 0.0
      %749 = vmatprep.subr.mxu0 0.0
      %750 = vmatpush1.msra.mxu0 0.0
      %751 = vmatprep.subr.mxu0 0.0
      %752 = vmatpush1.msra.mxu0 0.0
      %753 = vmatprep.subr.mxu0 0.0
      %754 = vmatpush1.msra.mxu0 0.0
      %755 = vmatprep.subr.mxu0 0.0
      %756 = vmatpush1.msra.mxu0 0.0
      %757 = vmatprep.subr.mxu0 0.0
      %758 = vmatpush1.msra.mxu0 0.0
      %759 = vmatprep.subr.mxu0 0.0
      %760 = vmatpush1.msra.mxu0 0.0
      %761 = vmatprep.subr.mxu0 0.0
      %762 = vmatpush1.msra.mxu0 0.0
      %763 = vmatprep.subr.mxu0 0.0
      %764 = vmatpush1.msra.mxu0 0.0
      %765 = vmatprep.subr.mxu0 0.0
      %766 = vmatpush1.msra.mxu0 0.0
      %767 = vmatprep.subr.mxu0 0.0
      %768 = vmatpush1.msra.mxu0 0.0
      %769 = vmatprep.subr.mxu0 0.0
      %770 = vmatpush1.msra.mxu0 0.0
      %771 = vmatprep.subr.mxu0 0.0
      %772 = vmatpush1.msra.mxu0 0.0
      %773 = vmatprep.subr.mxu0 0.0
      %774 = vmatpush1.msra.mxu0 0.0
      %775 = vmatprep.subr.mxu0 0.0
      %776 = vmatpush1.msra.mxu0 0.0
      %777 = vmatprep.subr.mxu0 0.0
      %778 = vmatpush1.msra.mxu0 0.0
      %779 = vmatprep.subr.mxu0 0.0
      %780 = vmatpush1.msra.mxu0 0.0
      %781 = vmatprep.subr.mxu0 0.0
      %782 = vmatpush1.msra.mxu0 0.0
      %783 = vmatprep.subr.mxu0 0.0
      %784 = vmatpush1.msra.mxu0 0.0
      %785 = vmatprep.subr.mxu0 0.0
      %786 = vmatpush1.msra.mxu0 0.0
      %787 = vmatprep.subr.mxu0 0.0
      %788 = vmatpush1.msra.mxu0 0.0
      %789 = vmatprep.subr.mxu0 0.0
      %790 = vmatpush1.msra.mxu0 0.0
      %791 = vmatprep.subr.mxu0 0.0
      %792 = vmatpush1.msra.mxu0 0.0
      %793 = vmatprep.subr.mxu0 0.0
      %794 = vmatpush1.msra.mxu0 0.0
      %795 = vmatprep.subr.mxu0 0.0
      %796 = vmatpush1.msra.mxu0 0.0
      %797 = vmatprep.subr.mxu0 0.0
      %798 = vmatpush1.msra.mxu0 0.0
      %799 = vmatprep.subr.mxu0 0.0
      %800 = vmatpush1.msra.mxu0 0.0
      %801 = vmatprep.subr.mxu0 0.0
      %802 = vmatpush1.msra.mxu0 0.0
      %803 = vmatprep.subr.mxu0 0.0
      %804 = vmatpush1.msra.mxu0 0.0
      %805 = vmatprep.subr.mxu0 0.0
      %806 = vmatpush1.msra.mxu0 0.0
      %807 = vmatprep.subr.mxu0 0.0
      %808 = vmatpush1.msra.mxu0 0.0
      %809 = vmatprep.mubr.f32.mxu0 0.0
      %810 = vmatmul.mubr.f32.gmra.mrb[0].mxu0 %v665
      %v811 = vpop.f32.mrb[0].mxu0
      %v812 = vadd.f32 %v741, %v811
      %v813 = vpop.f32.mrb[0].mxu0
      %814 = vdwg.mxu0
      %s815 = scalar_lea.vmem [#allocation9], %s661
      %v816 = vld [vmem:[%s815] sm:$0x3]
      %v818 = vsel %vm586, %v239, 0
      %820 = vmatprep.subr.mxu0 0.0
      %821 = vmatpush1.msra.mxu0 %v818
      %822 = vmatprep.subr.mxu0 0.0
      %823 = vmatpush1.msra.mxu0 0.0
      %824 = vmatprep.subr.mxu0 0.0
      %825 = vmatpush1.msra.mxu0 0.0
      %826 = vmatprep.subr.mxu0 0.0
      %827 = vmatpush1.msra.mxu0 0.0
      %828 = vmatprep.subr.mxu0 0.0
      %829 = vmatpush1.msra.mxu0 0.0
      %830 = vmatprep.subr.mxu0 0.0
      %831 = vmatpush1.msra.mxu0 0.0
      %832 = vmatprep.subr.mxu0 0.0
      %833 = vmatpush1.msra.mxu0 0.0
      %834 = vmatprep.subr.mxu0 0.0
      %835 = vmatpush1.msra.mxu0 0.0
      %836 = vmatprep.subr.mxu0 0.0
      %837 = vmatpush1.msra.mxu0 0.0
      %838 = vmatprep.subr.mxu0 0.0
      %839 = vmatpush1.msra.mxu0 0.0
      %840 = vmatprep.subr.mxu0 0.0
      %841 = vmatpush1.msra.mxu0 0.0
      %842 = vmatprep.subr.mxu0 0.0
      %843 = vmatpush1.msra.mxu0 0.0
      %844 = vmatprep.subr.mxu0 0.0
      %845 = vmatpush1.msra.mxu0 0.0
      %846 = vmatprep.subr.mxu0 0.0
      %847 = vmatpush1.msra.mxu0 0.0
      %848 = vmatprep.subr.mxu0 0.0
      %849 = vmatpush1.msra.mxu0 0.0
      %850 = vmatprep.subr.mxu0 0.0
      %851 = vmatpush1.msra.mxu0 0.0
      %852 = vmatprep.subr.mxu0 0.0
      %853 = vmatpush1.msra.mxu0 0.0
      %854 = vmatprep.subr.mxu0 0.0
      %855 = vmatpush1.msra.mxu0 0.0
      %856 = vmatprep.subr.mxu0 0.0
      %857 = vmatpush1.msra.mxu0 0.0
      %858 = vmatprep.subr.mxu0 0.0
      %859 = vmatpush1.msra.mxu0 0.0
      %860 = vmatprep.subr.mxu0 0.0
      %861 = vmatpush1.msra.mxu0 0.0
      %862 = vmatprep.subr.mxu0 0.0
      %863 = vmatpush1.msra.mxu0 0.0
      %864 = vmatprep.subr.mxu0 0.0
      %865 = vmatpush1.msra.mxu0 0.0
      %866 = vmatprep.subr.mxu0 0.0
      %867 = vmatpush1.msra.mxu0 0.0
      %868 = vmatprep.subr.mxu0 0.0
      %869 = vmatpush1.msra.mxu0 0.0
      %870 = vmatprep.subr.mxu0 0.0
      %871 = vmatpush1.msra.mxu0 0.0
      %872 = vmatprep.subr.mxu0 0.0
      %873 = vmatpush1.msra.mxu0 0.0
      %874 = vmatprep.subr.mxu0 0.0
      %875 = vmatpush1.msra.mxu0 0.0
      %876 = vmatprep.subr.mxu0 0.0
      %877 = vmatpush1.msra.mxu0 0.0
      %878 = vmatprep.subr.mxu0 0.0
      %879 = vmatpush1.msra.mxu0 0.0
      %880 = vmatprep.subr.mxu0 0.0
      %881 = vmatpush1.msra.mxu0 0.0
      %882 = vmatprep.subr.mxu0 0.0
      %883 = vmatpush1.msra.mxu0 0.0
      %884 = vmatprep.mubr.f32.mxu0 0.0
      %885 = vmatmul.mubr.f32.gmra.mrb[0].mxu0 %v665
      %v886 = vpop.f32.mrb[0].mxu0
      %v887 = vadd.f32 %v816, %v886
      %v888 = vpop.f32.mrb[0].mxu0
      %889 = vdwg.mxu0
      %v891 = vlaneseq
      %v892 = vshrl.u32 %v891, 7
      %v893 = vsub.s32 0, %v892
      %v894 = vrot.slane %v252, %v893
      %896 = vmatprep.subr.mxu0 0.0
      %897 = vmatpush1.msra.mxu0 %v240
      %898 = vmatprep.subr.mxu0 0.0
      %899 = vmatpush1.msra.mxu0 %v241
      %900 = vmatprep.subr.mxu0 0.0
      %901 = vmatpush1.msra.mxu0 %v242
      %902 = vmatprep.subr.mxu0 0.0
      %903 = vmatpush1.msra.mxu0 %v243
      %904 = vmatprep.subr.mxu0 0.0
      %905 = vmatpush1.msra.mxu0 0.0
      %906 = vmatprep.subr.mxu0 0.0
      %907 = vmatpush1.msra.mxu0 0.0
      %908 = vmatprep.subr.mxu0 0.0
      %909 = vmatpush1.msra.mxu0 0.0
      %910 = vmatprep.subr.mxu0 0.0
      %911 = vmatpush1.msra.mxu0 0.0
      %912 = vmatprep.subr.mxu0 0.0
      %913 = vmatpush1.msra.mxu0 0.0
      %914 = vmatprep.subr.mxu0 0.0
      %915 = vmatpush1.msra.mxu0 0.0
      %916 = vmatprep.subr.mxu0 0.0
      %917 = vmatpush1.msra.mxu0 0.0
      %918 = vmatprep.subr.mxu0 0.0
      %919 = vmatpush1.msra.mxu0 0.0
      %920 = vmatprep.subr.mxu0 0.0
      %921 = vmatpush1.msra.mxu0 0.0
      %922 = vmatprep.subr.mxu0 0.0
      %923 = vmatpush1.msra.mxu0 0.0
      %924 = vmatprep.subr.mxu0 0.0
      %925 = vmatpush1.msra.mxu0 0.0
      %926 = vmatprep.subr.mxu0 0.0
      %927 = vmatpush1.msra.mxu0 0.0
      %928 = vmatprep.subr.mxu0 0.0
      %929 = vmatpush1.msra.mxu0 0.0
      %930 = vmatprep.subr.mxu0 0.0
      %931 = vmatpush1.msra.mxu0 0.0
      %932 = vmatprep.subr.mxu0 0.0
      %933 = vmatpush1.msra.mxu0 0.0
      %934 = vmatprep.subr.mxu0 0.0
      %935 = vmatpush1.msra.mxu0 0.0
      %936 = vmatprep.subr.mxu0 0.0
      %937 = vmatpush1.msra.mxu0 0.0
      %938 = vmatprep.subr.mxu0 0.0
      %939 = vmatpush1.msra.mxu0 0.0
      %940 = vmatprep.subr.mxu0 0.0
      %941 = vmatpush1.msra.mxu0 0.0
      %942 = vmatprep.subr.mxu0 0.0
      %943 = vmatpush1.msra.mxu0 0.0
      %944 = vmatprep.subr.mxu0 0.0
      %945 = vmatpush1.msra.mxu0 0.0
      %946 = vmatprep.subr.mxu0 0.0
      %947 = vmatpush1.msra.mxu0 0.0
      %948 = vmatprep.subr.mxu0 0.0
      %949 = vmatpush1.msra.mxu0 0.0
      %950 = vmatprep.subr.mxu0 0.0
      %951 = vmatpush1.msra.mxu0 0.0
      %952 = vmatprep.subr.mxu0 0.0
      %953 = vmatpush1.msra.mxu0 0.0
      %954 = vmatprep.subr.mxu0 0.0
      %955 = vmatpush1.msra.mxu0 0.0
      %956 = vmatprep.subr.mxu0 0.0
      %957 = vmatpush1.msra.mxu0 0.0
      %958 = vmatprep.subr.mxu0 0.0
      %959 = vmatpush1.msra.mxu0 0.0
      %960 = vmatprep.mubr.f32.mxu0 0.0
      %961 = vmatmul.mubr.f32.gmra.mrb[0].mxu0 %v272
      %v962 = vpop.f32.mrb[0].mxu0
      %v963 = vadd.f32 %v894, %v962
      %v964 = vpop.f32.mrb[0].mxu0
      %965 = vdwg.mxu0
      %v967 = vlaneseq
      %v968 = vshrl.u32 %v967, 7
      %v969 = vsub.s32 0, %v968
      %v970 = vrot.slane %v253, %v969
      %972 = vmatprep.subr.mxu0 0.0
      %973 = vmatpush1.msra.mxu0 %v244
      %974 = vmatprep.subr.mxu0 0.0
      %975 = vmatpush1.msra.mxu0 %v245
      %976 = vmatprep.subr.mxu0 0.0
      %977 = vmatpush1.msra.mxu0 %v246
      %978 = vmatprep.subr.mxu0 0.0
      %979 = vmatpush1.msra.mxu0 %v247
      %980 = vmatprep.subr.mxu0 0.0
      %981 = vmatpush1.msra.mxu0 0.0
      %982 = vmatprep.subr.mxu0 0.0
      %983 = vmatpush1.msra.mxu0 0.0
      %984 = vmatprep.subr.mxu0 0.0
      %985 = vmatpush1.msra.mxu0 0.0
      %986 = vmatprep.subr.mxu0 0.0
      %987 = vmatpush1.msra.mxu0 0.0
      %988 = vmatprep.subr.mxu0 0.0
      %989 = vmatpush1.msra.mxu0 0.0
      %990 = vmatprep.subr.mxu0 0.0
      %991 = vmatpush1.msra.mxu0 0.0
      %992 = vmatprep.subr.mxu0 0.0
      %993 = vmatpush1.msra.mxu0 0.0
      %994 = vmatprep.subr.mxu0 0.0
      %995 = vmatpush1.msra.mxu0 0.0
      %996 = vmatprep.subr.mxu0 0.0
      %997 = vmatpush1.msra.mxu0 0.0
      %998 = vmatprep.subr.mxu0 0.0
      %999 = vmatpush1.msra.mxu0 0.0
      %1000 = vmatprep.subr.mxu0 0.0
      %1001 = vmatpush1.msra.mxu0 0.0
      %1002 = vmatprep.subr.mxu0 0.0
      %1003 = vmatpush1.msra.mxu0 0.0
      %1004 = vmatprep.subr.mxu0 0.0
      %1005 = vmatpush1.msra.mxu0 0.0
      %1006 = vmatprep.subr.mxu0 0.0
      %1007 = vmatpush1.msra.mxu0 0.0
      %1008 = vmatprep.subr.mxu0 0.0
      %1009 = vmatpush1.msra.mxu0 0.0
      %1010 = vmatprep.subr.mxu0 0.0
      %1011 = vmatpush1.msra.mxu0 0.0
      %1012 = vmatprep.subr.mxu0 0.0
      %1013 = vmatpush1.msra.mxu0 0.0
      %1014 = vmatprep.subr.mxu0 0.0
      %1015 = vmatpush1.msra.mxu0 0.0
      %1016 = vmatprep.subr.mxu0 0.0
      %1017 = vmatpush1.msra.mxu0 0.0
      %1018 = vmatprep.subr.mxu0 0.0
      %1019 = vmatpush1.msra.mxu0 0.0
      %1020 = vmatprep.subr.mxu0 0.0
      %1021 = vmatpush1.msra.mxu0 0.0
      %1022 = vmatprep.subr.mxu0 0.0
      %1023 = vmatpush1.msra.mxu0 0.0
      %1024 = vmatprep.subr.mxu0 0.0
      %1025 = vmatpush1.msra.mxu0 0.0
      %1026 = vmatprep.subr.mxu0 0.0
      %1027 = vmatpush1.msra.mxu0 0.0
      %1028 = vmatprep.subr.mxu0 0.0
      %1029 = vmatpush1.msra.mxu0 0.0
      %1030 = vmatprep.subr.mxu0 0.0
      %1031 = vmatpush1.msra.mxu0 0.0
      %1032 = vmatprep.subr.mxu0 0.0
      %1033 = vmatpush1.msra.mxu0 0.0
      %1034 = vmatprep.subr.mxu0 0.0
      %1035 = vmatpush1.msra.mxu0 0.0
      %1036 = vmatprep.mubr.f32.mxu0 0.0
      %1037 = vmatmul.mubr.f32.gmra.mrb[0].mxu0 %v272
      %v1038 = vpop.f32.mrb[0].mxu0
      %v1039 = vadd.f32 %v970, %v1038
      %v1040 = vpop.f32.mrb[0].mxu0
      %1041 = vdwg.mxu0
      %v1043 = vlaneseq
      %v1044 = vshrl.u32 %v1043, 7
      %v1045 = vsub.s32 0, %v1044
      %v1046 = vrot.slane %v254, %v1045
      %1048 = vmatprep.subr.mxu0 0.0
      %1049 = vmatpush1.msra.mxu0 %v248
      %1050 = vmatprep.subr.mxu0 0.0
      %1051 = vmatpush1.msra.mxu0 %v249
      %1052 = vmatprep.subr.mxu0 0.0
      %1053 = vmatpush1.msra.mxu0 %v250
      %1054 = vmatprep.subr.mxu0 0.0
      %1055 = vmatpush1.msra.mxu0 %v251
      %1056 = vmatprep.subr.mxu0 0.0
      %1057 = vmatpush1.msra.mxu0 0.0
      %1058 = vmatprep.subr.mxu0 0.0
      %1059 = vmatpush1.msra.mxu0 0.0
      %1060 = vmatprep.subr.mxu0 0.0
      %1061 = vmatpush1.msra.mxu0 0.0
      %1062 = vmatprep.subr.mxu0 0.0
      %1063 = vmatpush1.msra.mxu0 0.0
      %1064 = vmatprep.subr.mxu0 0.0
      %1065 = vmatpush1.msra.mxu0 0.0
      %1066 = vmatprep.subr.mxu0 0.0
      %1067 = vmatpush1.msra.mxu0 0.0
      %1068 = vmatprep.subr.mxu0 0.0
      %1069 = vmatpush1.msra.mxu0 0.0
      %1070 = vmatprep.subr.mxu0 0.0
      %1071 = vmatpush1.msra.mxu0 0.0
      %1072 = vmatprep.subr.mxu0 0.0
      %1073 = vmatpush1.msra.mxu0 0.0
      %1074 = vmatprep.subr.mxu0 0.0
      %1075 = vmatpush1.msra.mxu0 0.0
      %1076 = vmatprep.subr.mxu0 0.0
      %1077 = vmatpush1.msra.mxu0 0.0
      %1078 = vmatprep.subr.mxu0 0.0
      %1079 = vmatpush1.msra.mxu0 0.0
      %1080 = vmatprep.subr.mxu0 0.0
      %1081 = vmatpush1.msra.mxu0 0.0
      %1082 = vmatprep.subr.mxu0 0.0
      %1083 = vmatpush1.msra.mxu0 0.0
      %1084 = vmatprep.subr.mxu0 0.0
      %1085 = vmatpush1.msra.mxu0 0.0
      %1086 = vmatprep.subr.mxu0 0.0
      %1087 = vmatpush1.msra.mxu0 0.0
      %1088 = vmatprep.subr.mxu0 0.0
      %1089 = vmatpush1.msra.mxu0 0.0
      %1090 = vmatprep.subr.mxu0 0.0
      %1091 = vmatpush1.msra.mxu0 0.0
      %1092 = vmatprep.subr.mxu0 0.0
      %1093 = vmatpush1.msra.mxu0 0.0
      %1094 = vmatprep.subr.mxu0 0.0
      %1095 = vmatpush1.msra.mxu0 0.0
      %1096 = vmatprep.subr.mxu0 0.0
      %1097 = vmatpush1.msra.mxu0 0.0
      %1098 = vmatprep.subr.mxu0 0.0
      %1099 = vmatpush1.msra.mxu0 0.0
      %1100 = vmatprep.subr.mxu0 0.0
      %1101 = vmatpush1.msra.mxu0 0.0
      %1102 = vmatprep.subr.mxu0 0.0
      %1103 = vmatpush1.msra.mxu0 0.0
      %1104 = vmatprep.subr.mxu0 0.0
      %1105 = vmatpush1.msra.mxu0 0.0
      %1106 = vmatprep.subr.mxu0 0.0
      %1107 = vmatpush1.msra.mxu0 0.0
      %1108 = vmatprep.subr.mxu0 0.0
      %1109 = vmatpush1.msra.mxu0 0.0
      %1110 = vmatprep.subr.mxu0 0.0
      %1111 = vmatpush1.msra.mxu0 0.0
      %1112 = vmatprep.mubr.f32.mxu0 0.0
      %1113 = vmatmul.mubr.f32.gmra.mrb[0].mxu0 %v272
      %v1114 = vpop.f32.mrb[0].mxu0
      %v1115 = vadd.f32 %v1046, %v1114
      %v1116 = vpop.f32.mrb[0].mxu0
      %1117 = vdwg.mxu0
      %v1118 = vadd.f32 %v737, %v963
      %v1119 = vxor.u32 %v1118, 2147483648
      %v1120 = vmul.f32 %v1119, 1.442695
      %v1121 = vpow.pop %v1120
      %v1122 = vadd.f32 %v1121, 1.0
      %v1123 = vrcp.pop %v1122
      %v1124 = vmul.f32 1.0, %v1123
      %v1125 = vadd.f32 %v812, %v1039
      %v1126 = vxor.u32 %v1125, 2147483648
      %v1127 = vmul.f32 %v1126, 1.442695
      %v1128 = vpow.pop %v1127
      %v1129 = vadd.f32 %v1128, 1.0
      %v1130 = vrcp.pop %v1129
      %v1131 = vmul.f32 1.0, %v1130
      %v1132 = vmul.f32 %v1124, %v1115
      %v1133 = vadd.f32 %v887, %v1132
      %v1134 = vtanh.pop %v1133
      %v1135 = vsub.f32 1.0, %v1131
      %v1136 = vmul.f32 %v1135, %v1134
      %v1137 = vmul.f32 %v1131, %v263
      %v1138 = vadd.f32 %v1136, %v1137
      %1139 = vst.msk [vmem:[#allocation2] sm:$0x3] %vm255, %v1138
      %s1140 = scalar_lea.vmem [#allocation24], %s661
      %1141 = vst.msk [vmem:[%s1140] sm:$0x3] %vm255, %v1138
      %v1142 = vlaneseq
      %v1143 = vshrl.u32 %v1142, 7
      %v1144 = vsub.s32 %v425, %v1143
      %v1145 = vrot.slane %v535, %v1144
      %v1146 = vlaneseq
      %v1147 = vshrl.u32 %v1146, 7
      %v1148 = vsub.s32 %v430, %v1147
      %v1149 = vrot.slane %v540, %v1148
      %v1150 = vsel %vm435, %v1149, %v1145
      %v1151 = vlaneseq
      %v1152 = vshrl.u32 %v1151, 7
      %v1153 = vsub.s32 %v425, %v1152
      %v1154 = vrot.slane %v545, %v1153
      %v1155 = vlaneseq
      %v1156 = vshrl.u32 %v1155, 7
      %v1157 = vsub.s32 %v430, %v1156
      %v1158 = vrot.slane %v550, %v1157
      %v1159 = vsel %vm435, %v1158, %v1154
      %v1160 = vsel %vm446, %v1159, %v1150
      %s1162 = scalar_lea.vmem [#allocation25], %s661
      %1163 = vst.msk [vmem:[%s1162] sm:$0x3] %vm449, %v1160
    $region134: #{tpu_custom_call.1} parent=1 // loop_footer
      %s262 = sadd.s32 1, %s258
    $region135: #{tpu_custom_call.1} parent=1 // loop_footer_branch
      %257 = sbr.rel target = $region131
    $region136: #{tpu_custom_call.1} parent=1 // loop_exit
      _
    // Predicated region
    $region137: #{tpu_custom_call.1} parent=1 // pred_check
      _
    $region138: #{tpu_custom_call.1} parent=1 // pred_check_branch
      %1165 = sbr.rel (0) target = $region140
    $region139: #{tpu_custom_call.1} parent=1 // pred_region
      %s1167 = ssub.s32 256, 256
      %1168 = vsyncadd [#allocation6], %s1167
      %s1169 = sshll.u32 [#allocation24], 4
      %s1170 = int_to_ptr.vmem [resolvable:$true] %s1169
      %1175 = dma.vmem_to_hbm [thread:$0]  %s1170, 256, %s20, [#allocation6], 32, 32, 2
    $region140: #{tpu_custom_call.1} parent=1 // pred_fallthru
      _
    // Predicated region
    $region141: #{tpu_custom_call.1} parent=1 // pred_check
      _
    $region142: #{tpu_custom_call.1} parent=1 // pred_check_branch
      %1177 = sbr.rel (0) target = $region144
    $region143: #{tpu_custom_call.1} parent=1 // pred_region
      %s1179 = ssub.s32 256, 256
      %1180 = vsyncadd [#allocation26], %s1179
      %s1181 = sshll.u32 [#allocation25], 4
      %s1182 = int_to_ptr.vmem [resolvable:$true] %s1181
      %1187 = dma.vmem_to_hbm [thread:$0]  %s1182, 256, %s21, [#allocation26], 32, 32, 2
    $region144: #{tpu_custom_call.1} parent=1 // pred_fallthru
      _
    // Predicated region
    $region145: #{tpu_custom_call.1} parent=1 // pred_check
      _
    $region146: #{tpu_custom_call.1} parent=1 // pred_check_branch
      %1189 = sbr.rel (0) target = $region148
    $region147: #{tpu_custom_call.1} parent=1 // pred_region
      %1190 = dma.done [#allocation6], 256
    $region148: #{tpu_custom_call.1} parent=1 // pred_fallthru
      _
    // Predicated region
    $region149: #{tpu_custom_call.1} parent=1 // pred_check
      _
    $region150: #{tpu_custom_call.1} parent=1 // pred_check_branch
      %1192 = sbr.rel (0) target = $region152
    $region151: #{tpu_custom_call.1} parent=1 // pred_region
      %1193 = dma.done [#allocation26], 256
    $region152: #{tpu_custom_call.1} parent=1 // pred_fallthru
      _
    %1194 = vsyncpa [#allocation5], 1
    %1195 = vsyncpa [#allocation8], 1
    %1196 = vsyncpa [#allocation11], 1
    %1197 = vsyncpa [#allocation14], 1
    %1198 = vsyncpa [#allocation17], 1
    %1199 = vsyncpa [#allocation20], 1
    %1200 = vsyncpa [#allocation23], 1
    %1201 = vsyncpa [#allocation6], 1
    %1202 = vsyncpa [#allocation26], 1

</llo_original>
